<compile_context>
chip_gen: v7x
topology: tpu7x:2x2x1
jax: 0.10.0
libtpu: 0.0.40
codegen_flags: <defaults>
</compile_context>

<pallas_src>
import functools

import jax
import jax.numpy as jnp
from jax.experimental import pallas as pl
from jax.experimental.pallas import tpu as pltpu

VMEM_SPEC = pl.BlockSpec(memory_space=pltpu.MemorySpace.VMEM)
BF16 = jnp.bfloat16
F32 = jnp.float32


# ------------------------------ fused forward kernel -------------------------
def fused_forward_kernel(adj_ref, invdeg_ref, x_ref, selpool_ref, invcnt_ref, flow_ref,
                         c1w_ref, c1b_ref,
                         c2w_ref, c2b_ref,
                         wih_ref, whh_ref, lb_ref,
                         wf_ref, bflow_ref,
                         w1gp_ref, w1f_ref, b1_ref,
                         w2t_ref, b2_ref,
                         o_ref, *, seq_len, num_paths, hidden):
    adj = adj_ref[...]                                      # (N, N) bf16 integer counts
    invdeg = invdeg_ref[...]                                # (N, 1) f32
    x = x_ref[...]                                          # (N, F) bf16
    H, B, L = hidden, num_paths, seq_len

    # --- SAGEConv + ReLU (PyG: lin_l(mean_agg(h)) + lin_r(h), bias in lin_l) ---
    # reassociated:   relu( (A_cnt @ (h Wl)) * (1/deg) + h Wr + b )
    # Wl|Wr fused into one (in, 2H) RHS -> single thin-K MXU pass, split on lanes.
    def sage(h_in, w_ref, b_ref):
        pr = jnp.dot(h_in, w_ref[...], preferred_element_type=F32)     # (N, 2H)
        p = pr[:, :H].astype(BF16)                                      # mean-agg branch
        r = pr[:, H:]                                                   # root branch
        agg = jnp.dot(adj, p, preferred_element_type=F32) * invdeg      # f32 1/deg scale
        return jnp.maximum(agg + r + b_ref[...], 0.0).astype(BF16)

    h1 = sage(x, c1w_ref, c1b_ref)
    h2 = sage(h1, c2w_ref, c2b_ref)                         # (N, H) node embeddings

    # --- path gather (one-hot rows, time-major) + global_mean_pool indicator rows,
    #     fused as ONE matmul against the shared RHS h2, then split ---
    ps = jnp.dot(selpool_ref[...], h2, preferred_element_type=F32)      # (L*B + B, H)
    px = ps[:L * B, :].astype(BF16)                                      # path node embs
    graph_emb = ps[L * B:, :] * invcnt_ref[...]                          # (B, H) f32 mean

    # --- LSTM: input projection hoisted out of the time loop ---
    gx = (jnp.dot(px, wih_ref[...], preferred_element_type=F32)
          + lb_ref[...])                                                 # (L*B, 4H)

    whh = whh_ref[...]                                       # (H, 4H) bf16, gate order [i,f,o,g]
    h = jnp.zeros((B, H), F32)
    c = jnp.zeros((B, H), F32)
    # short fixed-length path -> static unroll; gate slices lane-aligned (H % 128 == 0)
    for t in range(L):
        gates = gx[t * B:(t + 1) * B, :] + jnp.dot(
            h.astype(BF16), whh, preferred_element_type=F32)
        # gates pre-permuted wrapper-side to [i, f, o, g]: one wide sigmoid + one tanh
        sig = jax.nn.sigmoid(gates[:, :3 * H])
        i_g = sig[:, 0 * H:1 * H]
        f_g = sig[:, 1 * H:2 * H]
        o_g = sig[:, 2 * H:3 * H]
        g_g = jnp.tanh(gates[:, 3 * H:])
        c = f_g * c + i_g * g_g
        h = o_g * jnp.tanh(c)
    hn = h                                                   # (B, H) final hidden

    # --- flow encoder: Linear + ReLU ---
    flow_emb = jnp.maximum(
        jnp.dot(flow_ref[...], wf_ref[...], preferred_element_type=F32)
        + bflow_ref[...], 0.0)                               # (B, H//2)

    # --- scorer MLP layer 1: concat([graph, path]) @ [W1g; W1p] + flow @ W1f + b1 ---
    gp = jnp.concatenate([graph_emb, hn], axis=1).astype(BF16)           # (B, 2H)
    h1s = (jnp.dot(gp, w1gp_ref[...], preferred_element_type=F32)
           + jnp.dot(flow_emb.astype(BF16), w1f_ref[...], preferred_element_type=F32)
           + b1_ref[...])
    h1s = jnp.maximum(h1s, 0.0).astype(BF16)                 # (B, H)

    # --- scorer layer 2, emitted lane-dense as a (1, B) row: (1,H) @ (H,B) ---
    # TODO(synk): if num_paths grows, produce h1s pre-transposed to avoid the XLU
    # transpose and pad B to a multiple of 128 for unmasked lane-dense stores.
    o_ref[...] = (jnp.dot(w2t_ref[...], h1s.T, preferred_element_type=F32)
                  + b2_ref[...])


# ------------------------------- glue (JAX) ----------------------------------
def build_adj_counts(edge_index, num_nodes):
    # dense integer adjacency counts for PyG-style "mean" aggregation over incoming
    # edges (edge_index[0] = src, edge_index[1] = dst); 1/deg applied in-kernel in f32.
    src, dst = edge_index[0], edge_index[1]
    a = jnp.zeros((num_nodes, num_nodes), jnp.float32).at[dst, src].add(1.0)
    inv_deg = 1.0 / jnp.maximum(jnp.sum(a, axis=1, keepdims=True), 1.0)
    return a.astype(BF16), inv_deg


def _permute_gates_ifog(w):
    # PyTorch LSTM gate order [i, f, g, o] along the 4H axis -> [i, f, o, g]
    i, f, g, o = jnp.split(w, 4, axis=1)
    return jnp.concatenate([i, f, o, g], axis=1)


def forward(params, x, edge_index, batch, path_idx, flow, *, num_graphs):
    n = x.shape[0]
    b, l = path_idx.shape
    h_dim = params['conv1_wl'].shape[1]
    assert h_dim % 128 == 0, "hidden_dim must be a multiple of 128 for lane-aligned gates"

    adj, inv_deg = build_adj_counts(edge_index, n)

    # global_mean_pool: 0/1 indicator rows (exact in bf16), f32 1/count applied in-kernel
    pool = (batch[None, :] == jnp.arange(num_graphs)[:, None]).astype(jnp.float32)
    inv_cnt = 1.0 / jnp.maximum(pool.sum(axis=1, keepdims=True), 1.0)    # (B, 1) f32

    # path gather as one-hot selection rows, time-major: row t*B + b selects node
    # path_idx[b, t].
    # TODO(synk): original module supports ragged per-path lengths; paths here are
    # fixed-length so all paths batch through one LSTM recurrence.
    tmaj = path_idx.T.reshape(-1)
    sel = (tmaj[:, None] == jnp.arange(n)[None, :]).astype(jnp.float32)

    # sel rows first (so the px slice starts at 0 and L*B stays sublane-aligned),
    # pool indicator rows after.
    selpool = jnp.concatenate([sel, pool], axis=0).astype(BF16)          # (L*B + B, N)

    # --- fuse weights wrapper-side ---
    c1w = jnp.concatenate([params['conv1_wl'], params['conv1_wr']], axis=1).astype(BF16)
    c2w = jnp.concatenate([params['conv2_wl'], params['conv2_wr']], axis=1).astype(BF16)
    wih = _permute_gates_ifog(params['lstm_wih']).astype(BF16)
    whh = _permute_gates_ifog(params['lstm_whh']).astype(BF16)
    lb = _permute_gates_ifog(params['lstm_b'])
    w1gp = jnp.concatenate([params['w1g'], params['w1p']], axis=0).astype(BF16)  # (2H, H)

    args = (adj, inv_deg, x.astype(BF16), selpool, inv_cnt, flow.astype(BF16),
            c1w, params['conv1_b'],
            c2w, params['conv2_b'],
            wih, whh, lb,
            params['wf'].astype(BF16), params['bf'],
            w1gp, params['w1f'].astype(BF16), params['b1'],
            params['w2'].T.astype(BF16), params['b2'])

    kernel = functools.partial(fused_forward_kernel,
                               seq_len=l, num_paths=b, hidden=h_dim)
    # Whole-array VMEM residency is the right call at these sizes; see TODO at top for
    # the gridded / tiled large-N formulation.
    scores = pl.pallas_call(
        kernel,
        out_shape=jax.ShapeDtypeStruct((1, b), jnp.float32),
        in_specs=[VMEM_SPEC] * len(args),
        out_specs=VMEM_SPEC,
        compiler_params=pltpu.CompilerParams(vmem_limit_bytes=48 * 1024 * 1024),
    )(*args)
    return scores[0]  # matches torch.cat(path_scores): shape (num_paths,)


def init_params(key, node_dim, flow_dim, hidden):
    ks = jax.random.split(key, 16)
    s = 0.1

    def nrm(k, shape):
        return s * jax.random.normal(k, shape, jnp.float32)

    return dict(
        conv1_wl=nrm(ks[0], (node_dim, hidden)),
        conv1_wr=nrm(ks[1], (node_dim, hidden)),
        conv1_b=nrm(ks[2], (1, hidden)),
        conv2_wl=nrm(ks[3], (hidden, hidden)),
        conv2_wr=nrm(ks[4], (hidden, hidden)),
        conv2_b=nrm(ks[5], (1, hidden)),
        lstm_wih=nrm(ks[6], (hidden, 4 * hidden)),
        lstm_whh=nrm(ks[7], (hidden, 4 * hidden)),
        lstm_b=nrm(ks[8], (1, 4 * hidden)),          # b_ih + b_hh combined
        wf=nrm(ks[9], (flow_dim, hidden // 2)),
        bf=nrm(ks[10], (1, hidden // 2)),
        w1g=nrm(ks[11], (hidden, hidden)),           # W1 split: graph-emb block
        w1p=nrm(ks[12], (hidden, hidden)),           # W1 split: path-emb block
        w1f=nrm(ks[13], (hidden // 2, hidden)),      # W1 split: flow-emb block
        b1=nrm(ks[14], (1, hidden)),
        w2=nrm(ks[15], (hidden, 1)),
        b2=jnp.zeros((1, 1), jnp.float32),
    )


if __name__ == "__main__":
    NODE_DIM, FLOW_DIM, HIDDEN = 8, 4, 128   # hidden_dim matches the module default
    NUM_GRAPHS, NODES_PER_GRAPH, PATH_LEN = 2, 8, 4
    N = NUM_GRAPHS * NODES_PER_GRAPH

    key = jax.random.PRNGKey(0)
    kx, kf = jax.random.split(key, 2)
    x = jax.random.normal(kx, (N, NODE_DIM), jnp.float32)
    flow = jax.random.normal(kf, (NUM_GRAPHS, FLOW_DIM), jnp.float32)

    # bidirectional ring inside each graph of the batch
    src_list, dst_list = [], []
    for g in range(NUM_GRAPHS):
        for i in range(NODES_PER_GRAPH):
            a = g * NODES_PER_GRAPH + i
            b = g * NODES_PER_GRAPH + (i + 1) % NODES_PER_GRAPH
            src_list += [a, b]
            dst_list += [b, a]
    edge_index = jnp.array([src_list, dst_list], dtype=jnp.int32)
    batch = jnp.repeat(jnp.arange(NUM_GRAPHS, dtype=jnp.int32), NODES_PER_GRAPH)

    # one fixed-length path per graph (node indices into the batched node tensor)
    path_idx = jnp.stack(
        [g * NODES_PER_GRAPH + jnp.arange(PATH_LEN, dtype=jnp.int32)
         for g in range(NUM_GRAPHS)])

    params = init_params(jax.random.PRNGKey(42), NODE_DIM, FLOW_DIM, HIDDEN)

    fwd = jax.jit(functools.partial(forward, num_graphs=NUM_GRAPHS))
    out = fwd(params, x, edge_index, batch, path_idx, flow)
    jax.block_until_ready(out)
    assert out.shape == (NUM_GRAPHS,) and out.dtype == jnp.float32
    assert bool(jnp.all(jnp.isfinite(out)))
    print("KERNEL_OK")
</pallas_src>

<mosaic_0001>
module attributes {stable_mosaic.version = 11 : i64} {
  func.func private @main(%arg0: i32) attributes {dimension_semantics = [#tpu.dimension_semantics<core_parallel>], iteration_bounds = array<i64: 2>, tpu.core_type = #tpu.core_type<sc_scalar_subcore>, window_params = []} {
    return
  }
}

module attributes {stable_mosaic.version = 11 : i64} {
  func.func private @main(%arg0: i32) attributes {dimension_semantics = [#tpu.dimension_semantics<core_parallel>], iteration_bounds = array<i64: 2>, tpu.core_type = #tpu.core_type<sc_scalar_subcore>, window_params = []} {
    return
  }
}

module attributes {stable_mosaic.version = 11 : i64} {
  func.func @fused_forward_kernel(%arg0: memref<16x16xbf16, #tpu.memory_space<vmem>>, %arg1: memref<16x1xf32, #tpu.memory_space<vmem>>, %arg2: memref<16x8xbf16, #tpu.memory_space<vmem>>, %arg3: memref<10x16xbf16, #tpu.memory_space<vmem>>, %arg4: memref<2x1xf32, #tpu.memory_space<vmem>>, %arg5: memref<2x4xbf16, #tpu.memory_space<vmem>>, %arg6: memref<8x256xbf16, #tpu.memory_space<vmem>>, %arg7: memref<1x128xf32, #tpu.memory_space<vmem>>, %arg8: memref<128x256xbf16, #tpu.memory_space<vmem>>, %arg9: memref<1x128xf32, #tpu.memory_space<vmem>>, %arg10: memref<128x512xbf16, #tpu.memory_space<vmem>>, %arg11: memref<128x512xbf16, #tpu.memory_space<vmem>>, %arg12: memref<1x512xf32, #tpu.memory_space<vmem>>, %arg13: memref<4x64xbf16, #tpu.memory_space<vmem>>, %arg14: memref<1x64xf32, #tpu.memory_space<vmem>>, %arg15: memref<256x128xbf16, #tpu.memory_space<vmem>>, %arg16: memref<64x128xbf16, #tpu.memory_space<vmem>>, %arg17: memref<1x128xf32, #tpu.memory_space<vmem>>, %arg18: memref<1x128xbf16, #tpu.memory_space<vmem>>, %arg19: memref<1x1xf32, #tpu.memory_space<vmem>>, %arg20: memref<1x2xf32, #tpu.memory_space<vmem>>) attributes {dimension_semantics = [], scalar_prefetch = 0 : i64, scratch_operands = 0 : i64, tpu.core_type = #tpu.core_type<tc>} {
    %c0 = arith.constant 0 : index
    %c0_0 = arith.constant 0 : index
    %0 = vector.load %arg0[%c0, %c0_0] : memref<16x16xbf16, #tpu.memory_space<vmem>>, vector<16x16xbf16>
    %c0_1 = arith.constant 0 : index
    %c0_2 = arith.constant 0 : index
    %1 = vector.load %arg1[%c0_1, %c0_2] : memref<16x1xf32, #tpu.memory_space<vmem>>, vector<16x1xf32>
    %c0_3 = arith.constant 0 : index
    %c0_4 = arith.constant 0 : index
    %2 = vector.load %arg2[%c0_3, %c0_4] : memref<16x8xbf16, #tpu.memory_space<vmem>>, vector<16x8xbf16>
    %c0_5 = arith.constant 0 : index
    %c0_6 = arith.constant 0 : index
    %3 = vector.load %arg6[%c0_5, %c0_6] : memref<8x256xbf16, #tpu.memory_space<vmem>>, vector<8x256xbf16>
    %cst = arith.constant dense<0.000000e+00> : vector<16x256xf32>
    %4 = tpu.matmul %2, %3, %cst {dimension_numbers = #tpu.dot_dimension_numbers<[1], [0], [0], [1], [0, 0, 1, 1], [], []>} : vector<16x8xbf16>, vector<8x256xbf16>, vector<16x256xf32> -> vector<16x256xf32>
    %5 = vector.extract_strided_slice %4 {offsets = [0, 0], sizes = [16, 128], strides = [1, 1]} : vector<16x256xf32> to vector<16x128xf32>
    %6 = arith.truncf %5 : vector<16x128xf32> to vector<16x128xbf16>
    %7 = vector.extract_strided_slice %4 {offsets = [0, 128], sizes = [16, 128], strides = [1, 1]} : vector<16x256xf32> to vector<16x128xf32>
    %cst_7 = arith.constant dense<0.000000e+00> : vector<16x128xf32>
    %8 = tpu.matmul %0, %6, %cst_7 {dimension_numbers = #tpu.dot_dimension_numbers<[1], [0], [0], [1], [0, 0, 1, 1], [], []>} : vector<16x16xbf16>, vector<16x128xbf16>, vector<16x128xf32> -> vector<16x128xf32>
    %9 = vector.broadcast %1 : vector<16x1xf32> to vector<16x128xf32>
    %10 = arith.mulf %8, %9 : vector<16x128xf32>
    %11 = arith.addf %10, %7 : vector<16x128xf32>
    %c0_8 = arith.constant 0 : index
    %c0_9 = arith.constant 0 : index
    %12 = vector.load %arg7[%c0_8, %c0_9] : memref<1x128xf32, #tpu.memory_space<vmem>>, vector<1x128xf32>
    %13 = vector.broadcast %12 : vector<1x128xf32> to vector<16x128xf32>
    %14 = arith.addf %11, %13 : vector<16x128xf32>
    %cst_10 = arith.constant 0.000000e+00 : f32
    %15 = vector.broadcast %cst_10 : f32 to vector<16x128xf32>
    %16 = arith.maximumf %14, %15 : vector<16x128xf32>
    %17 = arith.truncf %16 : vector<16x128xf32> to vector<16x128xbf16>
    %c0_11 = arith.constant 0 : index
    %c0_12 = arith.constant 0 : index
    %18 = vector.load %arg8[%c0_11, %c0_12] : memref<128x256xbf16, #tpu.memory_space<vmem>>, vector<128x256xbf16>
    %cst_13 = arith.constant dense<0.000000e+00> : vector<16x256xf32>
    %19 = tpu.matmul %17, %18, %cst_13 {dimension_numbers = #tpu.dot_dimension_numbers<[1], [0], [0], [1], [0, 0, 1, 1], [], []>} : vector<16x128xbf16>, vector<128x256xbf16>, vector<16x256xf32> -> vector<16x256xf32>
    %20 = vector.extract_strided_slice %19 {offsets = [0, 0], sizes = [16, 128], strides = [1, 1]} : vector<16x256xf32> to vector<16x128xf32>
    %21 = arith.truncf %20 : vector<16x128xf32> to vector<16x128xbf16>
    %22 = vector.extract_strided_slice %19 {offsets = [0, 128], sizes = [16, 128], strides = [1, 1]} : vector<16x256xf32> to vector<16x128xf32>
    %cst_14 = arith.constant dense<0.000000e+00> : vector<16x128xf32>
    %23 = tpu.matmul %0, %21, %cst_14 {dimension_numbers = #tpu.dot_dimension_numbers<[1], [0], [0], [1], [0, 0, 1, 1], [], []>} : vector<16x16xbf16>, vector<16x128xbf16>, vector<16x128xf32> -> vector<16x128xf32>
    %24 = vector.broadcast %1 : vector<16x1xf32> to vector<16x128xf32>
    %25 = arith.mulf %23, %24 : vector<16x128xf32>
    %26 = arith.addf %25, %22 : vector<16x128xf32>
    %c0_15 = arith.constant 0 : index
    %c0_16 = arith.constant 0 : index
    %27 = vector.load %arg9[%c0_15, %c0_16] : memref<1x128xf32, #tpu.memory_space<vmem>>, vector<1x128xf32>
    %28 = vector.broadcast %27 : vector<1x128xf32> to vector<16x128xf32>
    %29 = arith.addf %26, %28 : vector<16x128xf32>
    %cst_17 = arith.constant 0.000000e+00 : f32
    %30 = vector.broadcast %cst_17 : f32 to vector<16x128xf32>
    %31 = arith.maximumf %29, %30 : vector<16x128xf32>
    %32 = arith.truncf %31 : vector<16x128xf32> to vector<16x128xbf16>
    %c0_18 = arith.constant 0 : index
    %c0_19 = arith.constant 0 : index
    %33 = vector.load %arg3[%c0_18, %c0_19] : memref<10x16xbf16, #tpu.memory_space<vmem>>, vector<10x16xbf16>
    %cst_20 = arith.constant dense<0.000000e+00> : vector<10x128xf32>
    %34 = tpu.matmul %33, %32, %cst_20 {dimension_numbers = #tpu.dot_dimension_numbers<[1], [0], [0], [1], [0, 0, 1, 1], [], []>} : vector<10x16xbf16>, vector<16x128xbf16>, vector<10x128xf32> -> vector<10x128xf32>
    %35 = vector.extract_strided_slice %34 {offsets = [0, 0], sizes = [8, 128], strides = [1, 1]} : vector<10x128xf32> to vector<8x128xf32>
    %36 = arith.truncf %35 : vector<8x128xf32> to vector<8x128xbf16>
    %37 = vector.extract_strided_slice %34 {offsets = [8, 0], sizes = [2, 128], strides = [1, 1]} : vector<10x128xf32> to vector<2x128xf32>
    %c0_21 = arith.constant 0 : index
    %c0_22 = arith.constant 0 : index
    %38 = vector.load %arg4[%c0_21, %c0_22] : memref<2x1xf32, #tpu.memory_space<vmem>>, vector<2x1xf32>
    %39 = vector.broadcast %38 : vector<2x1xf32> to vector<2x128xf32>
    %40 = arith.mulf %37, %39 : vector<2x128xf32>
    %c0_23 = arith.constant 0 : index
    %c0_24 = arith.constant 0 : index
    %41 = vector.load %arg10[%c0_23, %c0_24] : memref<128x512xbf16, #tpu.memory_space<vmem>>, vector<128x512xbf16>
    %cst_25 = arith.constant dense<0.000000e+00> : vector<8x512xf32>
    %42 = tpu.matmul %36, %41, %cst_25 {dimension_numbers = #tpu.dot_dimension_numbers<[1], [0], [0], [1], [0, 0, 1, 1], [], []>} : vector<8x128xbf16>, vector<128x512xbf16>, vector<8x512xf32> -> vector<8x512xf32>
    %c0_26 = arith.constant 0 : index
    %c0_27 = arith.constant 0 : index
    %43 = vector.load %arg12[%c0_26, %c0_27] : memref<1x512xf32, #tpu.memory_space<vmem>>, vector<1x512xf32>
    %44 = vector.broadcast %43 : vector<1x512xf32> to vector<8x512xf32>
    %45 = arith.addf %42, %44 : vector<8x512xf32>
    %c0_28 = arith.constant 0 : index
    %c0_29 = arith.constant 0 : index
    %46 = vector.load %arg11[%c0_28, %c0_29] : memref<128x512xbf16, #tpu.memory_space<vmem>>, vector<128x512xbf16>
    %cst_30 = arith.constant 0.000000e+00 : f32
    %47 = vector.broadcast %cst_30 : f32 to vector<2x128xf32>
    %cst_31 = arith.constant 0.000000e+00 : f32
    %48 = vector.broadcast %cst_31 : f32 to vector<2x128xf32>
    %49 = vector.extract_strided_slice %45 {offsets = [0, 0], sizes = [2, 512], strides = [1, 1]} : vector<8x512xf32> to vector<2x512xf32>
    %50 = arith.truncf %47 : vector<2x128xf32> to vector<2x128xbf16>
    %cst_32 = arith.constant dense<0.000000e+00> : vector<2x512xf32>
    %51 = tpu.matmul %50, %46, %cst_32 {dimension_numbers = #tpu.dot_dimension_numbers<[1], [0], [0], [1], [0, 0, 1, 1], [], []>} : vector<2x128xbf16>, vector<128x512xbf16>, vector<2x512xf32> -> vector<2x512xf32>
    %52 = arith.addf %49, %51 : vector<2x512xf32>
    %53 = vector.extract_strided_slice %52 {offsets = [0, 0], sizes = [2, 384], strides = [1, 1]} : vector<2x512xf32> to vector<2x384xf32>
    %54 = arith.negf %53 : vector<2x384xf32>
    %55 = math.exp %54 : vector<2x384xf32>
    %cst_33 = arith.constant 1.000000e+00 : f32
    %56 = vector.broadcast %cst_33 : f32 to vector<2x384xf32>
    %57 = arith.addf %56, %55 : vector<2x384xf32>
    %58 = arith.divf %56, %57 : vector<2x384xf32>
    %59 = vector.extract_strided_slice %58 {offsets = [0, 0], sizes = [2, 128], strides = [1, 1]} : vector<2x384xf32> to vector<2x128xf32>
    %60 = vector.extract_strided_slice %58 {offsets = [0, 128], sizes = [2, 128], strides = [1, 1]} : vector<2x384xf32> to vector<2x128xf32>
    %61 = vector.extract_strided_slice %58 {offsets = [0, 256], sizes = [2, 128], strides = [1, 1]} : vector<2x384xf32> to vector<2x128xf32>
    %62 = vector.extract_strided_slice %52 {offsets = [0, 384], sizes = [2, 128], strides = [1, 1]} : vector<2x512xf32> to vector<2x128xf32>
    %63 = math.tanh %62 : vector<2x128xf32>
    %64 = arith.mulf %60, %48 : vector<2x128xf32>
    %65 = arith.mulf %59, %63 : vector<2x128xf32>
    %66 = arith.addf %64, %65 : vector<2x128xf32>
    %67 = math.tanh %66 : vector<2x128xf32>
    %68 = arith.mulf %61, %67 : vector<2x128xf32>
    %69 = vector.extract_strided_slice %45 {offsets = [2, 0], sizes = [2, 512], strides = [1, 1]} : vector<8x512xf32> to vector<2x512xf32>
    %70 = arith.truncf %68 : vector<2x128xf32> to vector<2x128xbf16>
    %cst_34 = arith.constant dense<0.000000e+00> : vector<2x512xf32>
    %71 = tpu.matmul %70, %46, %cst_34 {dimension_numbers = #tpu.dot_dimension_numbers<[1], [0], [0], [1], [0, 0, 1, 1], [], []>} : vector<2x128xbf16>, vector<128x512xbf16>, vector<2x512xf32> -> vector<2x512xf32>
    %72 = arith.addf %69, %71 : vector<2x512xf32>
    %73 = vector.extract_strided_slice %72 {offsets = [0, 0], sizes = [2, 384], strides = [1, 1]} : vector<2x512xf32> to vector<2x384xf32>
    %74 = arith.negf %73 : vector<2x384xf32>
    %75 = math.exp %74 : vector<2x384xf32>
    %cst_35 = arith.constant 1.000000e+00 : f32
    %76 = vector.broadcast %cst_35 : f32 to vector<2x384xf32>
    %77 = arith.addf %76, %75 : vector<2x384xf32>
    %78 = arith.divf %76, %77 : vector<2x384xf32>
    %79 = vector.extract_strided_slice %78 {offsets = [0, 0], sizes = [2, 128], strides = [1, 1]} : vector<2x384xf32> to vector<2x128xf32>
    %80 = vector.extract_strided_slice %78 {offsets = [0, 128], sizes = [2, 128], strides = [1, 1]} : vector<2x384xf32> to vector<2x128xf32>
    %81 = vector.extract_strided_slice %78 {offsets = [0, 256], sizes = [2, 128], strides = [1, 1]} : vector<2x384xf32> to vector<2x128xf32>
    %82 = vector.extract_strided_slice %72 {offsets = [0, 384], sizes = [2, 128], strides = [1, 1]} : vector<2x512xf32> to vector<2x128xf32>
    %83 = math.tanh %82 : vector<2x128xf32>
    %84 = arith.mulf %80, %66 : vector<2x128xf32>
    %85 = arith.mulf %79, %83 : vector<2x128xf32>
    %86 = arith.addf %84, %85 : vector<2x128xf32>
    %87 = math.tanh %86 : vector<2x128xf32>
    %88 = arith.mulf %81, %87 : vector<2x128xf32>
    %89 = vector.extract_strided_slice %45 {offsets = [4, 0], sizes = [2, 512], strides = [1, 1]} : vector<8x512xf32> to vector<2x512xf32>
    %90 = arith.truncf %88 : vector<2x128xf32> to vector<2x128xbf16>
    %cst_36 = arith.constant dense<0.000000e+00> : vector<2x512xf32>
    %91 = tpu.matmul %90, %46, %cst_36 {dimension_numbers = #tpu.dot_dimension_numbers<[1], [0], [0], [1], [0, 0, 1, 1], [], []>} : vector<2x128xbf16>, vector<128x512xbf16>, vector<2x512xf32> -> vector<2x512xf32>
    %92 = arith.addf %89, %91 : vector<2x512xf32>
    %93 = vector.extract_strided_slice %92 {offsets = [0, 0], sizes = [2, 384], strides = [1, 1]} : vector<2x512xf32> to vector<2x384xf32>
    %94 = arith.negf %93 : vector<2x384xf32>
    %95 = math.exp %94 : vector<2x384xf32>
    %cst_37 = arith.constant 1.000000e+00 : f32
    %96 = vector.broadcast %cst_37 : f32 to vector<2x384xf32>
    %97 = arith.addf %96, %95 : vector<2x384xf32>
    %98 = arith.divf %96, %97 : vector<2x384xf32>
    %99 = vector.extract_strided_slice %98 {offsets = [0, 0], sizes = [2, 128], strides = [1, 1]} : vector<2x384xf32> to vector<2x128xf32>
    %100 = vector.extract_strided_slice %98 {offsets = [0, 128], sizes = [2, 128], strides = [1, 1]} : vector<2x384xf32> to vector<2x128xf32>
    %101 = vector.extract_strided_slice %98 {offsets = [0, 256], sizes = [2, 128], strides = [1, 1]} : vector<2x384xf32> to vector<2x128xf32>
    %102 = vector.extract_strided_slice %92 {offsets = [0, 384], sizes = [2, 128], strides = [1, 1]} : vector<2x512xf32> to vector<2x128xf32>
    %103 = math.tanh %102 : vector<2x128xf32>
    %104 = arith.mulf %100, %86 : vector<2x128xf32>
    %105 = arith.mulf %99, %103 : vector<2x128xf32>
    %106 = arith.addf %104, %105 : vector<2x128xf32>
    %107 = math.tanh %106 : vector<2x128xf32>
    %108 = arith.mulf %101, %107 : vector<2x128xf32>
    %109 = vector.extract_strided_slice %45 {offsets = [6, 0], sizes = [2, 512], strides = [1, 1]} : vector<8x512xf32> to vector<2x512xf32>
    %110 = arith.truncf %108 : vector<2x128xf32> to vector<2x128xbf16>
    %cst_38 = arith.constant dense<0.000000e+00> : vector<2x512xf32>
    %111 = tpu.matmul %110, %46, %cst_38 {dimension_numbers = #tpu.dot_dimension_numbers<[1], [0], [0], [1], [0, 0, 1, 1], [], []>} : vector<2x128xbf16>, vector<128x512xbf16>, vector<2x512xf32> -> vector<2x512xf32>
    %112 = arith.addf %109, %111 : vector<2x512xf32>
    %113 = vector.extract_strided_slice %112 {offsets = [0, 0], sizes = [2, 384], strides = [1, 1]} : vector<2x512xf32> to vector<2x384xf32>
    %114 = arith.negf %113 : vector<2x384xf32>
    %115 = math.exp %114 : vector<2x384xf32>
    %cst_39 = arith.constant 1.000000e+00 : f32
    %116 = vector.broadcast %cst_39 : f32 to vector<2x384xf32>
    %117 = arith.addf %116, %115 : vector<2x384xf32>
    %118 = arith.divf %116, %117 : vector<2x384xf32>
    %119 = vector.extract_strided_slice %118 {offsets = [0, 0], sizes = [2, 128], strides = [1, 1]} : vector<2x384xf32> to vector<2x128xf32>
    %120 = vector.extract_strided_slice %118 {offsets = [0, 128], sizes = [2, 128], strides = [1, 1]} : vector<2x384xf32> to vector<2x128xf32>
    %121 = vector.extract_strided_slice %118 {offsets = [0, 256], sizes = [2, 128], strides = [1, 1]} : vector<2x384xf32> to vector<2x128xf32>
    %122 = vector.extract_strided_slice %112 {offsets = [0, 384], sizes = [2, 128], strides = [1, 1]} : vector<2x512xf32> to vector<2x128xf32>
    %123 = math.tanh %122 : vector<2x128xf32>
    %124 = arith.mulf %120, %106 : vector<2x128xf32>
    %125 = arith.mulf %119, %123 : vector<2x128xf32>
    %126 = arith.addf %124, %125 : vector<2x128xf32>
    %127 = math.tanh %126 : vector<2x128xf32>
    %128 = arith.mulf %121, %127 : vector<2x128xf32>
    %c0_40 = arith.constant 0 : index
    %c0_41 = arith.constant 0 : index
    %129 = vector.load %arg5[%c0_40, %c0_41] : memref<2x4xbf16, #tpu.memory_space<vmem>>, vector<2x4xbf16>
    %c0_42 = arith.constant 0 : index
    %c0_43 = arith.constant 0 : index
    %130 = vector.load %arg13[%c0_42, %c0_43] : memref<4x64xbf16, #tpu.memory_space<vmem>>, vector<4x64xbf16>
    %cst_44 = arith.constant dense<0.000000e+00> : vector<2x64xf32>
    %131 = tpu.matmul %129, %130, %cst_44 {dimension_numbers = #tpu.dot_dimension_numbers<[1], [0], [0], [1], [0, 0, 1, 1], [], []>} : vector<2x4xbf16>, vector<4x64xbf16>, vector<2x64xf32> -> vector<2x64xf32>
    %c0_45 = arith.constant 0 : index
    %c0_46 = arith.constant 0 : index
    %132 = vector.load %arg14[%c0_45, %c0_46] : memref<1x64xf32, #tpu.memory_space<vmem>>, vector<1x64xf32>
    %133 = vector.broadcast %132 : vector<1x64xf32> to vector<2x64xf32>
    %134 = arith.addf %131, %133 : vector<2x64xf32>
    %cst_47 = arith.constant 0.000000e+00 : f32
    %135 = vector.broadcast %cst_47 : f32 to vector<2x64xf32>
    %136 = arith.maximumf %134, %135 : vector<2x64xf32>
    %137 = tpu.concatenate %40, %128 in 1 : vector<2x128xf32>, vector<2x128xf32> -> vector<2x256xf32>
    %138 = arith.truncf %137 : vector<2x256xf32> to vector<2x256xbf16>
    %c0_48 = arith.constant 0 : index
    %c0_49 = arith.constant 0 : index
    %139 = vector.load %arg15[%c0_48, %c0_49] : memref<256x128xbf16, #tpu.memory_space<vmem>>, vector<256x128xbf16>
    %cst_50 = arith.constant dense<0.000000e+00> : vector<2x128xf32>
    %140 = tpu.matmul %138, %139, %cst_50 {dimension_numbers = #tpu.dot_dimension_numbers<[1], [0], [0], [1], [0, 0, 1, 1], [], []>} : vector<2x256xbf16>, vector<256x128xbf16>, vector<2x128xf32> -> vector<2x128xf32>
    %141 = arith.truncf %136 : vector<2x64xf32> to vector<2x64xbf16>
    %c0_51 = arith.constant 0 : index
    %c0_52 = arith.constant 0 : index
    %142 = vector.load %arg16[%c0_51, %c0_52] : memref<64x128xbf16, #tpu.memory_space<vmem>>, vector<64x128xbf16>
    %cst_53 = arith.constant dense<0.000000e+00> : vector<2x128xf32>
    %143 = tpu.matmul %141, %142, %cst_53 {dimension_numbers = #tpu.dot_dimension_numbers<[1], [0], [0], [1], [0, 0, 1, 1], [], []>} : vector<2x64xbf16>, vector<64x128xbf16>, vector<2x128xf32> -> vector<2x128xf32>
    %144 = arith.addf %140, %143 : vector<2x128xf32>
    %c0_54 = arith.constant 0 : index
    %c0_55 = arith.constant 0 : index
    %145 = vector.load %arg17[%c0_54, %c0_55] : memref<1x128xf32, #tpu.memory_space<vmem>>, vector<1x128xf32>
    %146 = vector.broadcast %145 : vector<1x128xf32> to vector<2x128xf32>
    %147 = arith.addf %144, %146 : vector<2x128xf32>
    %cst_56 = arith.constant 0.000000e+00 : f32
    %148 = vector.broadcast %cst_56 : f32 to vector<2x128xf32>
    %149 = arith.maximumf %147, %148 : vector<2x128xf32>
    %150 = arith.truncf %149 : vector<2x128xf32> to vector<2x128xbf16>
    %c0_57 = arith.constant 0 : index
    %c0_58 = arith.constant 0 : index
    %151 = vector.load %arg18[%c0_57, %c0_58] : memref<1x128xbf16, #tpu.memory_space<vmem>>, vector<1x128xbf16>
    %152 = tpu.transpose %150, [1, 0] : vector<2x128xbf16> -> vector<128x2xbf16>
    %cst_59 = arith.constant dense<0.000000e+00> : vector<1x2xf32>
    %153 = tpu.matmul %151, %152, %cst_59 {dimension_numbers = #tpu.dot_dimension_numbers<[1], [0], [0], [1], [0, 0, 1, 1], [], []>} : vector<1x128xbf16>, vector<128x2xbf16>, vector<1x2xf32> -> vector<1x2xf32>
    %c0_60 = arith.constant 0 : index
    %c0_61 = arith.constant 0 : index
    %154 = vector.load %arg19[%c0_60, %c0_61] : memref<1x1xf32, #tpu.memory_space<vmem>>, vector<1x1xf32>
    %155 = vector.broadcast %154 : vector<1x1xf32> to vector<1x2xf32>
    %156 = arith.addf %153, %155 : vector<1x2xf32>
    %c0_62 = arith.constant 0 : index
    %c0_63 = arith.constant 0 : index
    %157 = vector.load %arg20[%c0_62, %c0_63] : memref<1x2xf32, #tpu.memory_space<vmem>>, vector<1x2xf32>
    tpu.vector_store %arg20[%c0_62, %c0_63], %156 {strides = array<i32>} : memref<1x2xf32, #tpu.memory_space<vmem>>, vector<1x2xf32>,
    return
  }
}

</mosaic_0001>

<llo_original>
// kernel: eq.22
$region0: #{eq.22}
  %s0 = inlined_call_operand.vmem [shape: s32[4,2], index: 0, kind: input, shape index: {}]
  %s1 = inlined_call_operand.vmem [shape: s32[8], index: 1, kind: output, shape index: {}]
  $region1: #{eq.22} parent=0
    #allocation0 [shape = 'u8[4096]{0}', space=vmem, size = 0x1000, scoped, tag = 'scoped mem for output reshape']
    #allocation1 [shape = 'u8[4096]{0}', space=vmem, size = 0x1000, scoped, tag = 'scoped mem for input reshape']
    %s3 = sshllo.u32 0, 4
    %v4 = vld [vmem:[%s0] sm:%s3]
    %5 = vst [vmem:[#allocation1] sm:%s3] %v4
    %v6 = vld [vmem:[#allocation1] sm:$0x1]
    %vm7 = vcmask 15360
    %8 = vst.msk [vmem:[#allocation0] sm:$0x1] %vm7, %v6
    %s9 = scalar_lea.vmem [#allocation1], 3
    %v10 = vld [vmem:[%s9] sm:$0x1]
    %11 = vrot.lane.b32.xlu0 %v10, 6
    %v12 = vpop.permute.xlu0 %11
    %vm13 = vcmask 64560
    %14 = vst.msk [vmem:[#allocation0] sm:$0x1] %vm13, %v12
    %s15 = scalar_lea.vmem [#allocation1], 2
    %v16 = vld [vmem:[%s15] sm:$0x1]
    %17 = vrot.lane.b32.xlu0 %v16, 4
    %v18 = vpop.permute.xlu0 %17
    %vm19 = vcmask 48160
    %20 = vst.msk [vmem:[#allocation0] sm:$0x1] %vm19, %v18
    %s21 = scalar_lea.vmem [#allocation1], 1
    %v22 = vld [vmem:[%s21] sm:$0x1]
    %23 = vrot.lane.b32.xlu0 %v22, 2
    %v24 = vpop.permute.xlu0 %23
    %vm25 = vcmask 31760
    %26 = vst.msk [vmem:[#allocation0] sm:$0x1] %vm25, %v24
    %s28 = sshllo.u32 0, 1
    %v30 = vld [vmem:[#allocation0] sm:%s28]
    %s31 = sshllo.u32 0, 1
    %32 = vst [vmem:[%s1] sm:%s31] %v30

// kernel: forward.1
$region0: #{forward.1}
  #allocation0 [shape = 'u32[]', space=smem, size = 0x4, offset = 0x4, fixed_abs, tag = 'smem constant byte address 0x4 - core index']
  #allocation1 [shape = 'u32[144,128]{1,0:T(1,128)}', space=vmem, size = 0x12000, scoped, tag = 'internal scratch']
  #allocation2 [shape = 'f32[1,1]{1,0:T(1,128)S(1)}', space=vmem, size = 0x200, scoped, tag = 'scoped memory for forward.1']
  %s0 = inlined_call_operand.vmem [shape: bf16[16,16], index: 0, kind: input, shape index: {}]
  %s1 = inlined_call_operand.vmem [shape: f32[16,1], index: 1, kind: input, shape index: {}]
  %s2 = inlined_call_operand.vmem [shape: bf16[16,8], index: 2, kind: input, shape index: {}]
  %s3 = inlined_call_operand.vmem [shape: bf16[10,16], index: 3, kind: input, shape index: {}]
  %s4 = inlined_call_operand.vmem [shape: f32[2,1], index: 4, kind: input, shape index: {}]
  %s5 = inlined_call_operand.vmem [shape: bf16[2,4], index: 5, kind: input, shape index: {}]
  %s6 = inlined_call_operand.vmem [shape: bf16[8,256], index: 6, kind: input, shape index: {}]
  %s7 = inlined_call_operand.vmem [shape: f32[1,128], index: 7, kind: input, shape index: {}]
  %s8 = inlined_call_operand.vmem [shape: bf16[128,256], index: 8, kind: input, shape index: {}]
  %s9 = inlined_call_operand.vmem [shape: f32[1,128], index: 9, kind: input, shape index: {}]
  %s10 = inlined_call_operand.vmem [shape: bf16[128,512], index: 10, kind: input, shape index: {}]
  %s11 = inlined_call_operand.vmem [shape: bf16[128,512], index: 11, kind: input, shape index: {}]
  %s12 = inlined_call_operand.vmem [shape: f32[1,512], index: 12, kind: input, shape index: {}]
  %s13 = inlined_call_operand.vmem [shape: bf16[4,64], index: 13, kind: input, shape index: {}]
  %s14 = inlined_call_operand.vmem [shape: f32[1,64], index: 14, kind: input, shape index: {}]
  %s15 = inlined_call_operand.vmem [shape: bf16[256,128], index: 15, kind: input, shape index: {}]
  %s16 = inlined_call_operand.vmem [shape: bf16[64,128], index: 16, kind: input, shape index: {}]
  %s17 = inlined_call_operand.vmem [shape: f32[1,128], index: 17, kind: input, shape index: {}]
  %s18 = inlined_call_operand.vmem [shape: bf16[1,128], index: 18, kind: input, shape index: {}]
  %s19 = inlined_call_operand.<no memory space> [shape: f32[1,1], index: 19, kind: input, shape index: {}]
  %s20 = inlined_call_operand.hbm [shape: f32[1,2], index: 20, kind: output, shape index: {}]
  %s21 = sld [smem:[#allocation0]]
  $region90: #{forward.1} parent=0
    _
  %s23 = ssub.s32 1, %s21
  %s24 = scalar_select 0, %s23, %s21
  %v25 = vstv %s19
  %26 = vst [vmem:[#allocation2] sm:$0x1] %v25
  $region1: #{forward.1} parent=0
    #allocation3 [shape = 'u8[512]{0}', space=vmem, size = 0x400, scoped, tag = 'output window, operand 0, single buffered']
    #allocation4 [shape = 's32[1]{0}', space=sflag, size = 0x4, scoped, tag = 'scoped memory for forward.1']
    %27 = vsyncpa [#allocation4], 0
    // Predicated region
    $region2: #{forward.1} parent=1 // pred_check
      _
    $region3: #{forward.1} parent=1 // pred_check_branch
      %29 = sbr.rel (0) target = $region5
    $region4: #{forward.1} parent=1 // pred_region
      _
    $region5: #{forward.1} parent=1 // pred_fallthru
      _
    // Predicated region
    $region6: #{forward.1} parent=1 // pred_check
      _
    $region7: #{forward.1} parent=1 // pred_check_branch
      %31 = sbr.rel (0) target = $region9
    $region8: #{forward.1} parent=1 // pred_region
      _
    $region9: #{forward.1} parent=1 // pred_fallthru
      _
    // Predicated region
    $region10: #{forward.1} parent=1 // pred_check
      _
    $region11: #{forward.1} parent=1 // pred_check_branch
      %33 = sbr.rel (0) target = $region13
    $region12: #{forward.1} parent=1 // pred_region
      _
    $region13: #{forward.1} parent=1 // pred_fallthru
      _
    // Predicated region
    $region14: #{forward.1} parent=1 // pred_check
      _
    $region15: #{forward.1} parent=1 // pred_check_branch
      %35 = sbr.rel (0) target = $region17
    $region16: #{forward.1} parent=1 // pred_region
      _
    $region17: #{forward.1} parent=1 // pred_fallthru
      _
    // Predicated region
    $region18: #{forward.1} parent=1 // pred_check
      _
    $region19: #{forward.1} parent=1 // pred_check_branch
      %37 = sbr.rel (0) target = $region21
    $region20: #{forward.1} parent=1 // pred_region
      _
    $region21: #{forward.1} parent=1 // pred_fallthru
      _
    // Predicated region
    $region22: #{forward.1} parent=1 // pred_check
      _
    $region23: #{forward.1} parent=1 // pred_check_branch
      %39 = sbr.rel (0) target = $region25
    $region24: #{forward.1} parent=1 // pred_region
      _
    $region25: #{forward.1} parent=1 // pred_fallthru
      _
    // Predicated region
    $region26: #{forward.1} parent=1 // pred_check
      _
    $region27: #{forward.1} parent=1 // pred_check_branch
      %41 = sbr.rel (0) target = $region29
    $region28: #{forward.1} parent=1 // pred_region
      _
    $region29: #{forward.1} parent=1 // pred_fallthru
      _
    // Predicated region
    $region30: #{forward.1} parent=1 // pred_check
      _
    $region31: #{forward.1} parent=1 // pred_check_branch
      %43 = sbr.rel (0) target = $region33
    $region32: #{forward.1} parent=1 // pred_region
      _
    $region33: #{forward.1} parent=1 // pred_fallthru
      _
    // Predicated region
    $region34: #{forward.1} parent=1 // pred_check
      _
    $region35: #{forward.1} parent=1 // pred_check_branch
      %45 = sbr.rel (0) target = $region37
    $region36: #{forward.1} parent=1 // pred_region
      _
    $region37: #{forward.1} parent=1 // pred_fallthru
      _
    // Predicated region
    $region38: #{forward.1} parent=1 // pred_check
      _
    $region39: #{forward.1} parent=1 // pred_check_branch
      %47 = sbr.rel (0) target = $region41
    $region40: #{forward.1} parent=1 // pred_region
      _
    $region41: #{forward.1} parent=1 // pred_fallthru
      _
    // Predicated region
    $region42: #{forward.1} parent=1 // pred_check
      _
    $region43: #{forward.1} parent=1 // pred_check_branch
      %49 = sbr.rel (0) target = $region45
    $region44: #{forward.1} parent=1 // pred_region
      _
    $region45: #{forward.1} parent=1 // pred_fallthru
      _
    // Predicated region
    $region46: #{forward.1} parent=1 // pred_check
      _
    $region47: #{forward.1} parent=1 // pred_check_branch
      %51 = sbr.rel (0) target = $region49
    $region48: #{forward.1} parent=1 // pred_region
      _
    $region49: #{forward.1} parent=1 // pred_fallthru
      _
    // Predicated region
    $region50: #{forward.1} parent=1 // pred_check
      _
    $region51: #{forward.1} parent=1 // pred_check_branch
      %53 = sbr.rel (0) target = $region53
    $region52: #{forward.1} parent=1 // pred_region
      _
    $region53: #{forward.1} parent=1 // pred_fallthru
      _
    // Predicated region
    $region54: #{forward.1} parent=1 // pred_check
      _
    $region55: #{forward.1} parent=1 // pred_check_branch
      %55 = sbr.rel (0) target = $region57
    $region56: #{forward.1} parent=1 // pred_region
      _
    $region57: #{forward.1} parent=1 // pred_fallthru
      _
    // Predicated region
    $region58: #{forward.1} parent=1 // pred_check
      _
    $region59: #{forward.1} parent=1 // pred_check_branch
      %57 = sbr.rel (0) target = $region61
    $region60: #{forward.1} parent=1 // pred_region
      _
    $region61: #{forward.1} parent=1 // pred_fallthru
      _
    // Predicated region
    $region62: #{forward.1} parent=1 // pred_check
      _
    $region63: #{forward.1} parent=1 // pred_check_branch
      %59 = sbr.rel (0) target = $region65
    $region64: #{forward.1} parent=1 // pred_region
      _
    $region65: #{forward.1} parent=1 // pred_fallthru
      _
    // Predicated region
    $region66: #{forward.1} parent=1 // pred_check
      _
    $region67: #{forward.1} parent=1 // pred_check_branch
      %61 = sbr.rel (0) target = $region69
    $region68: #{forward.1} parent=1 // pred_region
      _
    $region69: #{forward.1} parent=1 // pred_fallthru
      _
    // Predicated region
    $region70: #{forward.1} parent=1 // pred_check
      _
    $region71: #{forward.1} parent=1 // pred_check_branch
      %63 = sbr.rel (0) target = $region73
    $region72: #{forward.1} parent=1 // pred_region
      _
    $region73: #{forward.1} parent=1 // pred_fallthru
      _
    // Predicated region
    $region74: #{forward.1} parent=1 // pred_check
      _
    $region75: #{forward.1} parent=1 // pred_check_branch
      %65 = sbr.rel (0) target = $region77
    $region76: #{forward.1} parent=1 // pred_region
      _
    $region77: #{forward.1} parent=1 // pred_fallthru
      _
    // Predicated region
    $region78: #{forward.1} parent=1 // pred_check
      _
    $region79: #{forward.1} parent=1 // pred_check_branch
      %67 = sbr.rel (0) target = $region81
    $region80: #{forward.1} parent=1 // pred_region
      _
    $region81: #{forward.1} parent=1 // pred_fallthru
      _
    %v69 = vld [vmem:[%s0] sm:$0xf]
    %v70 = vld [vmem:[%s0 + $0x4] sm:$0xf]
    %v71 = vld [vmem:[%s1] sm:$0xff]
    %v72 = vld [vmem:[%s1 + $0x8] sm:$0xff]
    %v73 = vld [vmem:[%s2] sm:$0xf]
    %v74 = vld [vmem:[%s2 + $0x4] sm:$0xf]
    %v75 = vld [vmem:[%s6] sm:$0xff]
    %v78 = vunpack.c.l.b16 %v73
    %v79 = vunpack.c.l.b16 %v74
    %v80 = vpack.c.b16 %v79, %v78
    %v82 = vunpack.c.l.b16 %v75
    %v83 = vunpack.c.h.b16 %v75
    %v84 = vpack.c.b16 %v82, %v82
    %v85 = vpack.c.b16 %v83, %v83
    %vm86 = vcmask 64512
    %v88 = vsel %vm86, %v80, 0
    %vm90 = vcmask 1043456
    %v92 = vsel %vm90, %v84, 0
    %v95 = vsel %vm90, %v85, 0
    %97 = vmatprep.subr.bf16.mxu0 %v95
    %98 = vmatpush1.bf16.msra.mxu0 %v92
    %99 = vmatprep.subr.bf16.mxu0 0
    %100 = vmatpush1.bf16.msra.mxu0 0
    %101 = vmatprep.subr.bf16.mxu0 0
    %102 = vmatpush1.bf16.msra.mxu0 0
    %103 = vmatprep.subr.bf16.mxu0 0
    %104 = vmatpush1.bf16.msra.mxu0 0
    %105 = vmatprep.subr.bf16.mxu0 0
    %106 = vmatpush1.bf16.msra.mxu0 0
    %107 = vmatprep.subr.bf16.mxu0 0
    %108 = vmatpush1.bf16.msra.mxu0 0
    %109 = vmatprep.subr.bf16.mxu0 0
    %110 = vmatpush1.bf16.msra.mxu0 0
    %111 = vmatprep.subr.bf16.mxu0 0
    %112 = vmatpush1.bf16.msra.mxu0 0
    %113 = vmatprep.subr.bf16.mxu0 0
    %114 = vmatpush1.bf16.msra.mxu0 0
    %115 = vmatprep.subr.bf16.mxu0 0
    %116 = vmatpush1.bf16.msra.mxu0 0
    %117 = vmatprep.subr.bf16.mxu0 0
    %118 = vmatpush1.bf16.msra.mxu0 0
    %119 = vmatprep.subr.bf16.mxu0 0
    %120 = vmatpush1.bf16.msra.mxu0 0
    %121 = vmatprep.subr.bf16.mxu0 0
    %122 = vmatpush1.bf16.msra.mxu0 0
    %123 = vmatprep.subr.bf16.mxu0 0
    %124 = vmatpush1.bf16.msra.mxu0 0
    %125 = vmatprep.subr.bf16.mxu0 0
    %126 = vmatpush1.bf16.msra.mxu0 0
    %127 = vmatprep.subr.bf16.mxu0 0
    %128 = vmatpush1.bf16.msra.mxu0 0
    %129 = vmatprep.mubr.bf16.mxu0 0
    %130 = vmatmul.mubr.bf16.gmra.mrb[0].mxu0 %v88
    %v131 = vpop.f32.mrb[0].mxu0
    %v132 = vadd.f32 0.0, %v131
    %v133 = vpop.f32.mrb[0].mxu0
    %v134 = vadd.f32 0.0, %v133
    %v135 = vpop.f32.mrb[0].mxu0
    %v136 = vadd.f32 0.0, %v135
    %v137 = vpop.f32.mrb[0].mxu0
    %v138 = vadd.f32 0.0, %v137
    %139 = vdwg.mxu0
    %v140 = vpack.c.bf16 %v136, %v132
    %v143 = vunpack.c.l.b16 %v69
    %v144 = vunpack.c.l.b16 %v70
    %v145 = vpack.c.b16 %v144, %v143
    %vm146 = vcmask 130048
    %v148 = vsel %vm146, %v145, 0
    %150 = vmatprep.subr.bf16.mxu0 0
    %151 = vmatpush1.bf16.msra.mxu0 %v140
    %152 = vmatprep.subr.bf16.mxu0 0
    %153 = vmatpush1.bf16.msra.mxu0 0
    %154 = vmatprep.subr.bf16.mxu0 0
    %155 = vmatpush1.bf16.msra.mxu0 0
    %156 = vmatprep.subr.bf16.mxu0 0
    %157 = vmatpush1.bf16.msra.mxu0 0
    %158 = vmatprep.subr.bf16.mxu0 0
    %159 = vmatpush1.bf16.msra.mxu0 0
    %160 = vmatprep.subr.bf16.mxu0 0
    %161 = vmatpush1.bf16.msra.mxu0 0
    %162 = vmatprep.subr.bf16.mxu0 0
    %163 = vmatpush1.bf16.msra.mxu0 0
    %164 = vmatprep.subr.bf16.mxu0 0
    %165 = vmatpush1.bf16.msra.mxu0 0
    %166 = vmatprep.subr.bf16.mxu0 0
    %167 = vmatpush1.bf16.msra.mxu0 0
    %168 = vmatprep.subr.bf16.mxu0 0
    %169 = vmatpush1.bf16.msra.mxu0 0
    %170 = vmatprep.subr.bf16.mxu0 0
    %171 = vmatpush1.bf16.msra.mxu0 0
    %172 = vmatprep.subr.bf16.mxu0 0
    %173 = vmatpush1.bf16.msra.mxu0 0
    %174 = vmatprep.subr.bf16.mxu0 0
    %175 = vmatpush1.bf16.msra.mxu0 0
    %176 = vmatprep.subr.bf16.mxu0 0
    %177 = vmatpush1.bf16.msra.mxu0 0
    %178 = vmatprep.subr.bf16.mxu0 0
    %179 = vmatpush1.bf16.msra.mxu0 0
    %180 = vmatprep.subr.bf16.mxu0 0
    %181 = vmatpush1.bf16.msra.mxu0 0
    %182 = vmatprep.mubr.bf16.mxu0 0
    %183 = vmatmul.mubr.bf16.gmra.mrb[0].mxu0 %v148
    %v184 = vpop.f32.mrb[0].mxu0
    %v185 = vadd.f32 0.0, %v184
    %v186 = vpop.f32.mrb[0].mxu0
    %v187 = vpop.f32.mrb[0].mxu0
    %v188 = vadd.f32 0.0, %v187
    %v189 = vpop.f32.mrb[0].mxu0
    %190 = vdwg.mxu0
    %192 = vset.pattern.permute.xlu0 0
    %193 = vperm.xlu0 %192, %v71
    %v194 = vpop.permute.xlu0 %193
    %197 = vset.pattern.permute.xlu0 0
    %198 = vperm.xlu0 %197, %v72
    %v199 = vpop.permute.xlu0 %198
    %v201 = vmul.f32 %v185, %v194
    %v202 = vmul.f32 %v188, %v199
    %v203 = vadd.f32 %v201, %v134
    %v204 = vadd.f32 %v202, %v138
    %v205 = vld [vmem:[%s7] sm:$0x1]
    %v207 = vlaneseq
    %v208 = vshrl.u32 %v207, 7
    %v209 = vsub.s32 0, %v208
    %v210 = vrot.slane %v205, %v209
    %v212 = vadd.f32 %v203, %v210
    %v213 = vadd.f32 %v204, %v210
    %v214 = vmax.f32 %v212, 0.0
    %v215 = vmax.f32 %v213, 0.0
    %v216 = vpack.c.bf16 %v215, %v214
    %v217 = vld [vmem:[%s8] sm:$0xff]
    %v218 = vld [vmem:[%s8 + $0x8] sm:$0xff]
    %v219 = vld [vmem:[%s8 + $0x10] sm:$0xff]
    %v220 = vld [vmem:[%s8 + $0x18] sm:$0xff]
    %v221 = vld [vmem:[%s8 + $0x20] sm:$0xff]
    %v222 = vld [vmem:[%s8 + $0x28] sm:$0xff]
    %v223 = vld [vmem:[%s8 + $0x30] sm:$0xff]
    %v224 = vld [vmem:[%s8 + $0x38] sm:$0xff]
    %v225 = vld [vmem:[%s8 + $0x40] sm:$0xff]
    %v226 = vld [vmem:[%s8 + $0x48] sm:$0xff]
    %v227 = vld [vmem:[%s8 + $0x50] sm:$0xff]
    %v228 = vld [vmem:[%s8 + $0x58] sm:$0xff]
    %v229 = vld [vmem:[%s8 + $0x60] sm:$0xff]
    %v230 = vld [vmem:[%s8 + $0x68] sm:$0xff]
    %v231 = vld [vmem:[%s8 + $0x70] sm:$0xff]
    %v232 = vld [vmem:[%s8 + $0x78] sm:$0xff]
    %v249 = vunpack.c.l.b16 %v217
    %v250 = vunpack.c.h.b16 %v217
    %v251 = vunpack.c.l.b16 %v218
    %v252 = vunpack.c.h.b16 %v218
    %v253 = vunpack.c.l.b16 %v219
    %v254 = vunpack.c.h.b16 %v219
    %v255 = vunpack.c.l.b16 %v220
    %v256 = vunpack.c.h.b16 %v220
    %v257 = vunpack.c.l.b16 %v221
    %v258 = vunpack.c.h.b16 %v221
    %v259 = vunpack.c.l.b16 %v222
    %v260 = vunpack.c.h.b16 %v222
    %v261 = vunpack.c.l.b16 %v223
    %v262 = vunpack.c.h.b16 %v223
    %v263 = vunpack.c.l.b16 %v224
    %v264 = vunpack.c.h.b16 %v224
    %v265 = vunpack.c.l.b16 %v225
    %v266 = vunpack.c.h.b16 %v225
    %v267 = vunpack.c.l.b16 %v226
    %v268 = vunpack.c.h.b16 %v226
    %v269 = vunpack.c.l.b16 %v227
    %v270 = vunpack.c.h.b16 %v227
    %v271 = vunpack.c.l.b16 %v228
    %v272 = vunpack.c.h.b16 %v228
    %v273 = vunpack.c.l.b16 %v229
    %v274 = vunpack.c.h.b16 %v229
    %v275 = vunpack.c.l.b16 %v230
    %v276 = vunpack.c.h.b16 %v230
    %v277 = vunpack.c.l.b16 %v231
    %v278 = vunpack.c.h.b16 %v231
    %v279 = vunpack.c.l.b16 %v232
    %v280 = vunpack.c.h.b16 %v232
    %v281 = vpack.c.b16 %v251, %v249
    %v282 = vpack.c.b16 %v252, %v250
    %v283 = vpack.c.b16 %v255, %v253
    %v284 = vpack.c.b16 %v256, %v254
    %v285 = vpack.c.b16 %v259, %v257
    %v286 = vpack.c.b16 %v260, %v258
    %v287 = vpack.c.b16 %v263, %v261
    %v288 = vpack.c.b16 %v264, %v262
    %v289 = vpack.c.b16 %v267, %v265
    %v290 = vpack.c.b16 %v268, %v266
    %v291 = vpack.c.b16 %v271, %v269
    %v292 = vpack.c.b16 %v272, %v270
    %v293 = vpack.c.b16 %v275, %v273
    %v294 = vpack.c.b16 %v276, %v274
    %v295 = vpack.c.b16 %v279, %v277
    %v296 = vpack.c.b16 %v280, %v278
    %313 = vmatprep.subr.bf16.mxu0 %v282
    %314 = vmatpush1.bf16.msra.mxu0 %v281
    %315 = vmatprep.subr.bf16.mxu0 %v284
    %316 = vmatpush1.bf16.msra.mxu0 %v283
    %317 = vmatprep.subr.bf16.mxu0 %v286
    %318 = vmatpush1.bf16.msra.mxu0 %v285
    %319 = vmatprep.subr.bf16.mxu0 %v288
    %320 = vmatpush1.bf16.msra.mxu0 %v287
    %321 = vmatprep.subr.bf16.mxu0 %v290
    %322 = vmatpush1.bf16.msra.mxu0 %v289
    %323 = vmatprep.subr.bf16.mxu0 %v292
    %324 = vmatpush1.bf16.msra.mxu0 %v291
    %325 = vmatprep.subr.bf16.mxu0 %v294
    %326 = vmatpush1.bf16.msra.mxu0 %v293
    %327 = vmatprep.subr.bf16.mxu0 %v296
    %328 = vmatpush1.bf16.msra.mxu0 %v295
    %329 = vmatprep.subr.bf16.mxu0 0
    %330 = vmatpush1.bf16.msra.mxu0 0
    %331 = vmatprep.subr.bf16.mxu0 0
    %332 = vmatpush1.bf16.msra.mxu0 0
    %333 = vmatprep.subr.bf16.mxu0 0
    %334 = vmatpush1.bf16.msra.mxu0 0
    %335 = vmatprep.subr.bf16.mxu0 0
    %336 = vmatpush1.bf16.msra.mxu0 0
    %337 = vmatprep.subr.bf16.mxu0 0
    %338 = vmatpush1.bf16.msra.mxu0 0
    %339 = vmatprep.subr.bf16.mxu0 0
    %340 = vmatpush1.bf16.msra.mxu0 0
    %341 = vmatprep.subr.bf16.mxu0 0
    %342 = vmatpush1.bf16.msra.mxu0 0
    %343 = vmatprep.subr.bf16.mxu0 0
    %344 = vmatpush1.bf16.msra.mxu0 0
    %345 = vmatprep.mubr.bf16.mxu0 0
    %346 = vmatmul.mubr.bf16.gmra.mrb[0].mxu0 %v216
    %v347 = vpop.f32.mrb[0].mxu0
    %v348 = vadd.f32 0.0, %v347
    %v349 = vpop.f32.mrb[0].mxu0
    %v350 = vadd.f32 0.0, %v349
    %v351 = vpop.f32.mrb[0].mxu0
    %v352 = vadd.f32 0.0, %v351
    %v353 = vpop.f32.mrb[0].mxu0
    %v354 = vadd.f32 0.0, %v353
    %355 = vdwg.mxu0
    %v356 = vpack.c.bf16 %v352, %v348
    %357 = vmatprep.subr.bf16.mxu0 0
    %358 = vmatpush1.bf16.msra.mxu0 %v356
    %359 = vmatprep.subr.bf16.mxu0 0
    %360 = vmatpush1.bf16.msra.mxu0 0
    %361 = vmatprep.subr.bf16.mxu0 0
    %362 = vmatpush1.bf16.msra.mxu0 0
    %363 = vmatprep.subr.bf16.mxu0 0
    %364 = vmatpush1.bf16.msra.mxu0 0
    %365 = vmatprep.subr.bf16.mxu0 0
    %366 = vmatpush1.bf16.msra.mxu0 0
    %367 = vmatprep.subr.bf16.mxu0 0
    %368 = vmatpush1.bf16.msra.mxu0 0
    %369 = vmatprep.subr.bf16.mxu0 0
    %370 = vmatpush1.bf16.msra.mxu0 0
    %371 = vmatprep.subr.bf16.mxu0 0
    %372 = vmatpush1.bf16.msra.mxu0 0
    %373 = vmatprep.subr.bf16.mxu0 0
    %374 = vmatpush1.bf16.msra.mxu0 0
    %375 = vmatprep.subr.bf16.mxu0 0
    %376 = vmatpush1.bf16.msra.mxu0 0
    %377 = vmatprep.subr.bf16.mxu0 0
    %378 = vmatpush1.bf16.msra.mxu0 0
    %379 = vmatprep.subr.bf16.mxu0 0
    %380 = vmatpush1.bf16.msra.mxu0 0
    %381 = vmatprep.subr.bf16.mxu0 0
    %382 = vmatpush1.bf16.msra.mxu0 0
    %383 = vmatprep.subr.bf16.mxu0 0
    %384 = vmatpush1.bf16.msra.mxu0 0
    %385 = vmatprep.subr.bf16.mxu0 0
    %386 = vmatpush1.bf16.msra.mxu0 0
    %387 = vmatprep.subr.bf16.mxu0 0
    %388 = vmatpush1.bf16.msra.mxu0 0
    %389 = vmatprep.mubr.bf16.mxu0 0
    %390 = vmatmul.mubr.bf16.gmra.mrb[0].mxu0 %v148
    %v391 = vpop.f32.mrb[0].mxu0
    %v392 = vadd.f32 0.0, %v391
    %v393 = vpop.f32.mrb[0].mxu0
    %v394 = vpop.f32.mrb[0].mxu0
    %v395 = vadd.f32 0.0, %v394
    %v396 = vpop.f32.mrb[0].mxu0
    %397 = vdwg.mxu0
    %v398 = vmul.f32 %v392, %v194
    %v399 = vmul.f32 %v395, %v199
    %v400 = vadd.f32 %v398, %v350
    %v401 = vadd.f32 %v399, %v354
    %v402 = vld [vmem:[%s9] sm:$0x1]
    %v404 = vlaneseq
    %v405 = vshrl.u32 %v404, 7
    %v406 = vsub.s32 0, %v405
    %v407 = vrot.slane %v402, %v406
    %v409 = vadd.f32 %v400, %v407
    %v410 = vadd.f32 %v401, %v407
    %v411 = vmax.f32 %v409, 0.0
    %v412 = vmax.f32 %v410, 0.0
    %v413 = vpack.c.bf16 %v412, %v411
    %v414 = vld [vmem:[%s3] sm:$0xf]
    %v415 = vld [vmem:[%s3 + $0x4] sm:$0x1]
    %v418 = vunpack.c.l.b16 %v414
    %v419 = vunpack.c.l.b16 %v415
    %v420 = vpack.c.b16 %v419, %v418
    %v422 = vsel %vm146, %v420, 0
    %424 = vmatprep.subr.bf16.mxu0 0
    %425 = vmatpush1.bf16.msra.mxu0 %v413
    %426 = vmatprep.subr.bf16.mxu0 0
    %427 = vmatpush1.bf16.msra.mxu0 0
    %428 = vmatprep.subr.bf16.mxu0 0
    %429 = vmatpush1.bf16.msra.mxu0 0
    %430 = vmatprep.subr.bf16.mxu0 0
    %431 = vmatpush1.bf16.msra.mxu0 0
    %432 = vmatprep.subr.bf16.mxu0 0
    %433 = vmatpush1.bf16.msra.mxu0 0
    %434 = vmatprep.subr.bf16.mxu0 0
    %435 = vmatpush1.bf16.msra.mxu0 0
    %436 = vmatprep.subr.bf16.mxu0 0
    %437 = vmatpush1.bf16.msra.mxu0 0
    %438 = vmatprep.subr.bf16.mxu0 0
    %439 = vmatpush1.bf16.msra.mxu0 0
    %440 = vmatprep.subr.bf16.mxu0 0
    %441 = vmatpush1.bf16.msra.mxu0 0
    %442 = vmatprep.subr.bf16.mxu0 0
    %443 = vmatpush1.bf16.msra.mxu0 0
    %444 = vmatprep.subr.bf16.mxu0 0
    %445 = vmatpush1.bf16.msra.mxu0 0
    %446 = vmatprep.subr.bf16.mxu0 0
    %447 = vmatpush1.bf16.msra.mxu0 0
    %448 = vmatprep.subr.bf16.mxu0 0
    %449 = vmatpush1.bf16.msra.mxu0 0
    %450 = vmatprep.subr.bf16.mxu0 0
    %451 = vmatpush1.bf16.msra.mxu0 0
    %452 = vmatprep.subr.bf16.mxu0 0
    %453 = vmatpush1.bf16.msra.mxu0 0
    %454 = vmatprep.subr.bf16.mxu0 0
    %455 = vmatpush1.bf16.msra.mxu0 0
    %456 = vmatprep.mubr.bf16.mxu0 0
    %457 = vmatmul.mubr.bf16.gmra.mrb[0].mxu0 %v422
    %v458 = vpop.f32.mrb[0].mxu0
    %v459 = vadd.f32 0.0, %v458
    %v460 = vpop.f32.mrb[0].mxu0
    %v461 = vpop.f32.mrb[0].mxu0
    %v462 = vadd.f32 0.0, %v461
    %v463 = vpop.f32.mrb[0].mxu0
    %464 = vdwg.mxu0
    %v465 = vpack.c.bf16 %v459, %v459
    %v466 = vld [vmem:[%s4] sm:$0x3]
    %468 = vset.pattern.permute.xlu0 0
    %469 = vperm.xlu0 %468, %v466
    %v470 = vpop.permute.xlu0 %469
    %v472 = vmul.f32 %v462, %v470
    %v473 = vld [vmem:[%s10] sm:$0xff]
    %v474 = vld [vmem:[%s10 + $0x8] sm:$0xff]
    %v475 = vld [vmem:[%s10 + $0x10] sm:$0xff]
    %v476 = vld [vmem:[%s10 + $0x18] sm:$0xff]
    %v477 = vld [vmem:[%s10 + $0x20] sm:$0xff]
    %v478 = vld [vmem:[%s10 + $0x28] sm:$0xff]
    %v479 = vld [vmem:[%s10 + $0x30] sm:$0xff]
    %v480 = vld [vmem:[%s10 + $0x38] sm:$0xff]
    %v481 = vld [vmem:[%s10 + $0x40] sm:$0xff]
    %v482 = vld [vmem:[%s10 + $0x48] sm:$0xff]
    %v483 = vld [vmem:[%s10 + $0x50] sm:$0xff]
    %v484 = vld [vmem:[%s10 + $0x58] sm:$0xff]
    %v485 = vld [vmem:[%s10 + $0x60] sm:$0xff]
    %v486 = vld [vmem:[%s10 + $0x68] sm:$0xff]
    %v487 = vld [vmem:[%s10 + $0x70] sm:$0xff]
    %v488 = vld [vmem:[%s10 + $0x78] sm:$0xff]
    %v489 = vld [vmem:[%s10 + $0x80] sm:$0xff]
    %v490 = vld [vmem:[%s10 + $0x88] sm:$0xff]
    %v491 = vld [vmem:[%s10 + $0x90] sm:$0xff]
    %v492 = vld [vmem:[%s10 + $0x98] sm:$0xff]
    %v493 = vld [vmem:[%s10 + $0xa0] sm:$0xff]
    %v494 = vld [vmem:[%s10 + $0xa8] sm:$0xff]
    %v495 = vld [vmem:[%s10 + $0xb0] sm:$0xff]
    %v496 = vld [vmem:[%s10 + $0xb8] sm:$0xff]
    %v497 = vld [vmem:[%s10 + $0xc0] sm:$0xff]
    %v498 = vld [vmem:[%s10 + $0xc8] sm:$0xff]
    %v499 = vld [vmem:[%s10 + $0xd0] sm:$0xff]
    %v500 = vld [vmem:[%s10 + $0xd8] sm:$0xff]
    %v501 = vld [vmem:[%s10 + $0xe0] sm:$0xff]
    %v502 = vld [vmem:[%s10 + $0xe8] sm:$0xff]
    %v503 = vld [vmem:[%s10 + $0xf0] sm:$0xff]
    %v504 = vld [vmem:[%s10 + $0xf8] sm:$0xff]
    %v505 = vld [vmem:[%s12] sm:$0xf]
    %v507 = vlaneseq
    %v508 = vshrl.u32 %v507, 7
    %v509 = vsub.s32 0, %v508
    %v510 = vrot.slane %v505, %v509
    %v511 = vlaneseq
    %v512 = vshrl.u32 %v511, 7
    %v513 = vsub.s32 1, %v512
    %v514 = vrot.slane %v505, %v513
    %v515 = vlaneseq
    %v516 = vshrl.u32 %v515, 7
    %v517 = vsub.s32 2, %v516
    %v518 = vrot.slane %v505, %v517
    %v519 = vlaneseq
    %v520 = vshrl.u32 %v519, 7
    %v521 = vsub.s32 3, %v520
    %v522 = vrot.slane %v505, %v521
    %v559 = vunpack.c.l.b16 %v473
    %v560 = vunpack.c.h.b16 %v473
    %v561 = vunpack.c.l.b16 %v474
    %v562 = vunpack.c.h.b16 %v474
    %v563 = vunpack.c.l.b16 %v475
    %v564 = vunpack.c.h.b16 %v475
    %v565 = vunpack.c.l.b16 %v476
    %v566 = vunpack.c.h.b16 %v476
    %v567 = vunpack.c.l.b16 %v477
    %v568 = vunpack.c.h.b16 %v477
    %v569 = vunpack.c.l.b16 %v478
    %v570 = vunpack.c.h.b16 %v478
    %v571 = vunpack.c.l.b16 %v479
    %v572 = vunpack.c.h.b16 %v479
    %v573 = vunpack.c.l.b16 %v480
    %v574 = vunpack.c.h.b16 %v480
    %v575 = vunpack.c.l.b16 %v481
    %v576 = vunpack.c.h.b16 %v481
    %v577 = vunpack.c.l.b16 %v482
    %v578 = vunpack.c.h.b16 %v482
    %v579 = vunpack.c.l.b16 %v483
    %v580 = vunpack.c.h.b16 %v483
    %v581 = vunpack.c.l.b16 %v484
    %v582 = vunpack.c.h.b16 %v484
    %v583 = vunpack.c.l.b16 %v485
    %v584 = vunpack.c.h.b16 %v485
    %v585 = vunpack.c.l.b16 %v486
    %v586 = vunpack.c.h.b16 %v486
    %v587 = vunpack.c.l.b16 %v487
    %v588 = vunpack.c.h.b16 %v487
    %v589 = vunpack.c.l.b16 %v488
    %v590 = vunpack.c.h.b16 %v488
    %v591 = vunpack.c.l.b16 %v489
    %v592 = vunpack.c.h.b16 %v489
    %v593 = vunpack.c.l.b16 %v490
    %v594 = vunpack.c.h.b16 %v490
    %v595 = vunpack.c.l.b16 %v491
    %v596 = vunpack.c.h.b16 %v491
    %v597 = vunpack.c.l.b16 %v492
    %v598 = vunpack.c.h.b16 %v492
    %v599 = vunpack.c.l.b16 %v493
    %v600 = vunpack.c.h.b16 %v493
    %v601 = vunpack.c.l.b16 %v494
    %v602 = vunpack.c.h.b16 %v494
    %v603 = vunpack.c.l.b16 %v495
    %v604 = vunpack.c.h.b16 %v495
    %v605 = vunpack.c.l.b16 %v496
    %v606 = vunpack.c.h.b16 %v496
    %v607 = vunpack.c.l.b16 %v497
    %v608 = vunpack.c.h.b16 %v497
    %v609 = vunpack.c.l.b16 %v498
    %v610 = vunpack.c.h.b16 %v498
    %v611 = vunpack.c.l.b16 %v499
    %v612 = vunpack.c.h.b16 %v499
    %v613 = vunpack.c.l.b16 %v500
    %v614 = vunpack.c.h.b16 %v500
    %v615 = vunpack.c.l.b16 %v501
    %v616 = vunpack.c.h.b16 %v501
    %v617 = vunpack.c.l.b16 %v502
    %v618 = vunpack.c.h.b16 %v502
    %v619 = vunpack.c.l.b16 %v503
    %v620 = vunpack.c.h.b16 %v503
    %v621 = vunpack.c.l.b16 %v504
    %v622 = vunpack.c.h.b16 %v504
    %v623 = vpack.c.b16 %v563, %v559
    %v624 = vpack.c.b16 %v564, %v560
    %v625 = vpack.c.b16 %v565, %v561
    %v626 = vpack.c.b16 %v566, %v562
    %v627 = vpack.c.b16 %v571, %v567
    %v628 = vpack.c.b16 %v572, %v568
    %v629 = vpack.c.b16 %v573, %v569
    %v630 = vpack.c.b16 %v574, %v570
    %v631 = vpack.c.b16 %v579, %v575
    %v632 = vpack.c.b16 %v580, %v576
    %v633 = vpack.c.b16 %v581, %v577
    %v634 = vpack.c.b16 %v582, %v578
    %v635 = vpack.c.b16 %v587, %v583
    %v636 = vpack.c.b16 %v588, %v584
    %v637 = vpack.c.b16 %v589, %v585
    %v638 = vpack.c.b16 %v590, %v586
    %v639 = vpack.c.b16 %v595, %v591
    %v640 = vpack.c.b16 %v596, %v592
    %v641 = vpack.c.b16 %v597, %v593
    %v642 = vpack.c.b16 %v598, %v594
    %v643 = vpack.c.b16 %v603, %v599
    %v644 = vpack.c.b16 %v604, %v600
    %v645 = vpack.c.b16 %v605, %v601
    %v646 = vpack.c.b16 %v606, %v602
    %v647 = vpack.c.b16 %v611, %v607
    %v648 = vpack.c.b16 %v612, %v608
    %v649 = vpack.c.b16 %v613, %v609
    %v650 = vpack.c.b16 %v614, %v610
    %v651 = vpack.c.b16 %v619, %v615
    %v652 = vpack.c.b16 %v620, %v616
    %v653 = vpack.c.b16 %v621, %v617
    %v654 = vpack.c.b16 %v622, %v618
    %687 = vmatprep.subr.bf16.mxu0 %v624
    %688 = vmatpush1.bf16.msra.mxu0 %v623
    %689 = vmatprep.subr.bf16.mxu0 %v628
    %690 = vmatpush1.bf16.msra.mxu0 %v627
    %691 = vmatprep.subr.bf16.mxu0 %v632
    %692 = vmatpush1.bf16.msra.mxu0 %v631
    %693 = vmatprep.subr.bf16.mxu0 %v636
    %694 = vmatpush1.bf16.msra.mxu0 %v635
    %695 = vmatprep.subr.bf16.mxu0 %v640
    %696 = vmatpush1.bf16.msra.mxu0 %v639
    %697 = vmatprep.subr.bf16.mxu0 %v644
    %698 = vmatpush1.bf16.msra.mxu0 %v643
    %699 = vmatprep.subr.bf16.mxu0 %v648
    %700 = vmatpush1.bf16.msra.mxu0 %v647
    %701 = vmatprep.subr.bf16.mxu0 %v652
    %702 = vmatpush1.bf16.msra.mxu0 %v651
    %703 = vmatprep.subr.bf16.mxu0 0
    %704 = vmatpush1.bf16.msra.mxu0 0
    %705 = vmatprep.subr.bf16.mxu0 0
    %706 = vmatpush1.bf16.msra.mxu0 0
    %707 = vmatprep.subr.bf16.mxu0 0
    %708 = vmatpush1.bf16.msra.mxu0 0
    %709 = vmatprep.subr.bf16.mxu0 0
    %710 = vmatpush1.bf16.msra.mxu0 0
    %711 = vmatprep.subr.bf16.mxu0 0
    %712 = vmatpush1.bf16.msra.mxu0 0
    %713 = vmatprep.subr.bf16.mxu0 0
    %714 = vmatpush1.bf16.msra.mxu0 0
    %715 = vmatprep.subr.bf16.mxu0 0
    %716 = vmatpush1.bf16.msra.mxu0 0
    %717 = vmatprep.subr.bf16.mxu0 0
    %718 = vmatpush1.bf16.msra.mxu0 0
    %719 = vmatprep.mubr.bf16.mxu0 0
    %720 = vmatmul.mubr.bf16.gmra.mrb[0].mxu0 %v465
    %v721 = vpop.f32.mrb[0].mxu0
    %v722 = vadd.f32 %v510, %v721
    %v723 = vpop.f32.mrb[0].mxu0
    %v724 = vadd.f32 %v514, %v723
    %v725 = vpop.f32.mrb[0].mxu0
    %v726 = vpop.f32.mrb[0].mxu0
    %727 = vdwg.mxu0
    %728 = vmatprep.subr.bf16.mxu0 %v626
    %729 = vmatpush1.bf16.msra.mxu0 %v625
    %730 = vmatprep.subr.bf16.mxu0 %v630
    %731 = vmatpush1.bf16.msra.mxu0 %v629
    %732 = vmatprep.subr.bf16.mxu0 %v634
    %733 = vmatpush1.bf16.msra.mxu0 %v633
    %734 = vmatprep.subr.bf16.mxu0 %v638
    %735 = vmatpush1.bf16.msra.mxu0 %v637
    %736 = vmatprep.subr.bf16.mxu0 %v642
    %737 = vmatpush1.bf16.msra.mxu0 %v641
    %738 = vmatprep.subr.bf16.mxu0 %v646
    %739 = vmatpush1.bf16.msra.mxu0 %v645
    %740 = vmatprep.subr.bf16.mxu0 %v650
    %741 = vmatpush1.bf16.msra.mxu0 %v649
    %742 = vmatprep.subr.bf16.mxu0 %v654
    %743 = vmatpush1.bf16.msra.mxu0 %v653
    %744 = vmatprep.subr.bf16.mxu0 0
    %745 = vmatpush1.bf16.msra.mxu0 0
    %746 = vmatprep.subr.bf16.mxu0 0
    %747 = vmatpush1.bf16.msra.mxu0 0
    %748 = vmatprep.subr.bf16.mxu0 0
    %749 = vmatpush1.bf16.msra.mxu0 0
    %750 = vmatprep.subr.bf16.mxu0 0
    %751 = vmatpush1.bf16.msra.mxu0 0
    %752 = vmatprep.subr.bf16.mxu0 0
    %753 = vmatpush1.bf16.msra.mxu0 0
    %754 = vmatprep.subr.bf16.mxu0 0
    %755 = vmatpush1.bf16.msra.mxu0 0
    %756 = vmatprep.subr.bf16.mxu0 0
    %757 = vmatpush1.bf16.msra.mxu0 0
    %758 = vmatprep.subr.bf16.mxu0 0
    %759 = vmatpush1.bf16.msra.mxu0 0
    %760 = vmatprep.mubr.bf16.mxu0 0
    %761 = vmatmul.mubr.bf16.gmra.mrb[0].mxu0 %v465
    %v762 = vpop.f32.mrb[0].mxu0
    %v763 = vadd.f32 %v518, %v762
    %v764 = vpop.f32.mrb[0].mxu0
    %v765 = vadd.f32 %v522, %v764
    %v766 = vpop.f32.mrb[0].mxu0
    %v767 = vpop.f32.mrb[0].mxu0
    %768 = vdwg.mxu0
    %v769 = vld [vmem:[%s11] sm:$0xff]
    %v770 = vld [vmem:[%s11 + $0x8] sm:$0xff]
    %v771 = vld [vmem:[%s11 + $0x10] sm:$0xff]
    %v772 = vld [vmem:[%s11 + $0x18] sm:$0xff]
    %v773 = vld [vmem:[%s11 + $0x20] sm:$0xff]
    %v774 = vld [vmem:[%s11 + $0x28] sm:$0xff]
    %v775 = vld [vmem:[%s11 + $0x30] sm:$0xff]
    %v776 = vld [vmem:[%s11 + $0x38] sm:$0xff]
    %v777 = vld [vmem:[%s11 + $0x40] sm:$0xff]
    %v778 = vld [vmem:[%s11 + $0x48] sm:$0xff]
    %v779 = vld [vmem:[%s11 + $0x50] sm:$0xff]
    %v780 = vld [vmem:[%s11 + $0x58] sm:$0xff]
    %v781 = vld [vmem:[%s11 + $0x60] sm:$0xff]
    %v782 = vld [vmem:[%s11 + $0x68] sm:$0xff]
    %v783 = vld [vmem:[%s11 + $0x70] sm:$0xff]
    %v784 = vld [vmem:[%s11 + $0x78] sm:$0xff]
    %v785 = vld [vmem:[%s11 + $0x80] sm:$0xff]
    %v786 = vld [vmem:[%s11 + $0x88] sm:$0xff]
    %v787 = vld [vmem:[%s11 + $0x90] sm:$0xff]
    %v788 = vld [vmem:[%s11 + $0x98] sm:$0xff]
    %v789 = vld [vmem:[%s11 + $0xa0] sm:$0xff]
    %v790 = vld [vmem:[%s11 + $0xa8] sm:$0xff]
    %v791 = vld [vmem:[%s11 + $0xb0] sm:$0xff]
    %v792 = vld [vmem:[%s11 + $0xb8] sm:$0xff]
    %v793 = vld [vmem:[%s11 + $0xc0] sm:$0xff]
    %v794 = vld [vmem:[%s11 + $0xc8] sm:$0xff]
    %v795 = vld [vmem:[%s11 + $0xd0] sm:$0xff]
    %v796 = vld [vmem:[%s11 + $0xd8] sm:$0xff]
    %v797 = vld [vmem:[%s11 + $0xe0] sm:$0xff]
    %v798 = vld [vmem:[%s11 + $0xe8] sm:$0xff]
    %v799 = vld [vmem:[%s11 + $0xf0] sm:$0xff]
    %v800 = vld [vmem:[%s11 + $0xf8] sm:$0xff]
    %v833 = vunpack.c.l.b16 %v769
    %v834 = vunpack.c.h.b16 %v769
    %v835 = vunpack.c.l.b16 %v770
    %v836 = vunpack.c.h.b16 %v770
    %v837 = vunpack.c.l.b16 %v771
    %v838 = vunpack.c.h.b16 %v771
    %v839 = vunpack.c.l.b16 %v772
    %v840 = vunpack.c.h.b16 %v772
    %v841 = vunpack.c.l.b16 %v773
    %v842 = vunpack.c.h.b16 %v773
    %v843 = vunpack.c.l.b16 %v774
    %v844 = vunpack.c.h.b16 %v774
    %v845 = vunpack.c.l.b16 %v775
    %v846 = vunpack.c.h.b16 %v775
    %v847 = vunpack.c.l.b16 %v776
    %v848 = vunpack.c.h.b16 %v776
    %v849 = vunpack.c.l.b16 %v777
    %v850 = vunpack.c.h.b16 %v777
    %v851 = vunpack.c.l.b16 %v778
    %v852 = vunpack.c.h.b16 %v778
    %v853 = vunpack.c.l.b16 %v779
    %v854 = vunpack.c.h.b16 %v779
    %v855 = vunpack.c.l.b16 %v780
    %v856 = vunpack.c.h.b16 %v780
    %v857 = vunpack.c.l.b16 %v781
    %v858 = vunpack.c.h.b16 %v781
    %v859 = vunpack.c.l.b16 %v782
    %v860 = vunpack.c.h.b16 %v782
    %v861 = vunpack.c.l.b16 %v783
    %v862 = vunpack.c.h.b16 %v783
    %v863 = vunpack.c.l.b16 %v784
    %v864 = vunpack.c.h.b16 %v784
    %v865 = vunpack.c.l.b16 %v785
    %v866 = vunpack.c.h.b16 %v785
    %v867 = vunpack.c.l.b16 %v786
    %v868 = vunpack.c.h.b16 %v786
    %v869 = vunpack.c.l.b16 %v787
    %v870 = vunpack.c.h.b16 %v787
    %v871 = vunpack.c.l.b16 %v788
    %v872 = vunpack.c.h.b16 %v788
    %v873 = vunpack.c.l.b16 %v789
    %v874 = vunpack.c.h.b16 %v789
    %v875 = vunpack.c.l.b16 %v790
    %v876 = vunpack.c.h.b16 %v790
    %v877 = vunpack.c.l.b16 %v791
    %v878 = vunpack.c.h.b16 %v791
    %v879 = vunpack.c.l.b16 %v792
    %v880 = vunpack.c.h.b16 %v792
    %v881 = vunpack.c.l.b16 %v793
    %v882 = vunpack.c.h.b16 %v793
    %v883 = vunpack.c.l.b16 %v794
    %v884 = vunpack.c.h.b16 %v794
    %v885 = vunpack.c.l.b16 %v795
    %v886 = vunpack.c.h.b16 %v795
    %v887 = vunpack.c.l.b16 %v796
    %v888 = vunpack.c.h.b16 %v796
    %v889 = vunpack.c.l.b16 %v797
    %v890 = vunpack.c.h.b16 %v797
    %v891 = vunpack.c.l.b16 %v798
    %v892 = vunpack.c.h.b16 %v798
    %v893 = vunpack.c.l.b16 %v799
    %v894 = vunpack.c.h.b16 %v799
    %v895 = vunpack.c.l.b16 %v800
    %v896 = vunpack.c.h.b16 %v800
    %v897 = vpack.c.b16 %v837, %v833
    %v898 = vpack.c.b16 %v838, %v834
    %v899 = vpack.c.b16 %v839, %v835
    %v900 = vpack.c.b16 %v840, %v836
    %v901 = vpack.c.b16 %v845, %v841
    %v902 = vpack.c.b16 %v846, %v842
    %v903 = vpack.c.b16 %v847, %v843
    %v904 = vpack.c.b16 %v848, %v844
    %v905 = vpack.c.b16 %v853, %v849
    %v906 = vpack.c.b16 %v854, %v850
    %v907 = vpack.c.b16 %v855, %v851
    %v908 = vpack.c.b16 %v856, %v852
    %v909 = vpack.c.b16 %v861, %v857
    %v910 = vpack.c.b16 %v862, %v858
    %v911 = vpack.c.b16 %v863, %v859
    %v912 = vpack.c.b16 %v864, %v860
    %v913 = vpack.c.b16 %v869, %v865
    %v914 = vpack.c.b16 %v870, %v866
    %v915 = vpack.c.b16 %v871, %v867
    %v916 = vpack.c.b16 %v872, %v868
    %v917 = vpack.c.b16 %v877, %v873
    %v918 = vpack.c.b16 %v878, %v874
    %v919 = vpack.c.b16 %v879, %v875
    %v920 = vpack.c.b16 %v880, %v876
    %v921 = vpack.c.b16 %v885, %v881
    %v922 = vpack.c.b16 %v886, %v882
    %v923 = vpack.c.b16 %v887, %v883
    %v924 = vpack.c.b16 %v888, %v884
    %v925 = vpack.c.b16 %v893, %v889
    %v926 = vpack.c.b16 %v894, %v890
    %v927 = vpack.c.b16 %v895, %v891
    %v928 = vpack.c.b16 %v896, %v892
    %961 = vmatprep.subr.bf16.mxu0 %v898
    %962 = vmatpush1.bf16.msra.mxu0 %v897
    %963 = vmatprep.subr.bf16.mxu0 %v902
    %964 = vmatpush1.bf16.msra.mxu0 %v901
    %965 = vmatprep.subr.bf16.mxu0 %v906
    %966 = vmatpush1.bf16.msra.mxu0 %v905
    %967 = vmatprep.subr.bf16.mxu0 %v910
    %968 = vmatpush1.bf16.msra.mxu0 %v909
    %969 = vmatprep.subr.bf16.mxu0 %v914
    %970 = vmatpush1.bf16.msra.mxu0 %v913
    %971 = vmatprep.subr.bf16.mxu0 %v918
    %972 = vmatpush1.bf16.msra.mxu0 %v917
    %973 = vmatprep.subr.bf16.mxu0 %v922
    %974 = vmatpush1.bf16.msra.mxu0 %v921
    %975 = vmatprep.subr.bf16.mxu0 %v926
    %976 = vmatpush1.bf16.msra.mxu0 %v925
    %977 = vmatprep.subr.bf16.mxu0 0
    %978 = vmatpush1.bf16.msra.mxu0 0
    %979 = vmatprep.subr.bf16.mxu0 0
    %980 = vmatpush1.bf16.msra.mxu0 0
    %981 = vmatprep.subr.bf16.mxu0 0
    %982 = vmatpush1.bf16.msra.mxu0 0
    %983 = vmatprep.subr.bf16.mxu0 0
    %984 = vmatpush1.bf16.msra.mxu0 0
    %985 = vmatprep.subr.bf16.mxu0 0
    %986 = vmatpush1.bf16.msra.mxu0 0
    %987 = vmatprep.subr.bf16.mxu0 0
    %988 = vmatpush1.bf16.msra.mxu0 0
    %989 = vmatprep.subr.bf16.mxu0 0
    %990 = vmatpush1.bf16.msra.mxu0 0
    %991 = vmatprep.subr.bf16.mxu0 0
    %992 = vmatpush1.bf16.msra.mxu0 0
    %993 = vmatprep.mubr.bf16.mxu0 0
    %994 = vmatmul.mubr.bf16.gmra.mrb[0].mxu0 0
    %v995 = vpop.f32.mrb[0].mxu0
    %v996 = vadd.f32 0.0, %v995
    %v997 = vpop.f32.mrb[0].mxu0
    %v998 = vadd.f32 0.0, %v997
    %v999 = vpop.f32.mrb[0].mxu0
    %v1000 = vpop.f32.mrb[0].mxu0
    %1001 = vdwg.mxu0
    %1002 = vmatprep.subr.bf16.mxu0 %v900
    %1003 = vmatpush1.bf16.msra.mxu0 %v899
    %1004 = vmatprep.subr.bf16.mxu0 %v904
    %1005 = vmatpush1.bf16.msra.mxu0 %v903
    %1006 = vmatprep.subr.bf16.mxu0 %v908
    %1007 = vmatpush1.bf16.msra.mxu0 %v907
    %1008 = vmatprep.subr.bf16.mxu0 %v912
    %1009 = vmatpush1.bf16.msra.mxu0 %v911
    %1010 = vmatprep.subr.bf16.mxu0 %v916
    %1011 = vmatpush1.bf16.msra.mxu0 %v915
    %1012 = vmatprep.subr.bf16.mxu0 %v920
    %1013 = vmatpush1.bf16.msra.mxu0 %v919
    %1014 = vmatprep.subr.bf16.mxu0 %v924
    %1015 = vmatpush1.bf16.msra.mxu0 %v923
    %1016 = vmatprep.subr.bf16.mxu0 %v928
    %1017 = vmatpush1.bf16.msra.mxu0 %v927
    %1018 = vmatprep.subr.bf16.mxu0 0
    %1019 = vmatpush1.bf16.msra.mxu0 0
    %1020 = vmatprep.subr.bf16.mxu0 0
    %1021 = vmatpush1.bf16.msra.mxu0 0
    %1022 = vmatprep.subr.bf16.mxu0 0
    %1023 = vmatpush1.bf16.msra.mxu0 0
    %1024 = vmatprep.subr.bf16.mxu0 0
    %1025 = vmatpush1.bf16.msra.mxu0 0
    %1026 = vmatprep.subr.bf16.mxu0 0
    %1027 = vmatpush1.bf16.msra.mxu0 0
    %1028 = vmatprep.subr.bf16.mxu0 0
    %1029 = vmatpush1.bf16.msra.mxu0 0
    %1030 = vmatprep.subr.bf16.mxu0 0
    %1031 = vmatpush1.bf16.msra.mxu0 0
    %1032 = vmatprep.subr.bf16.mxu0 0
    %1033 = vmatpush1.bf16.msra.mxu0 0
    %1034 = vmatprep.mubr.bf16.mxu0 0
    %1035 = vmatmul.mubr.bf16.gmra.mrb[0].mxu0 0
    %v1036 = vpop.f32.mrb[0].mxu0
    %v1037 = vadd.f32 0.0, %v1036
    %v1038 = vpop.f32.mrb[0].mxu0
    %v1039 = vadd.f32 0.0, %v1038
    %v1040 = vpop.f32.mrb[0].mxu0
    %v1041 = vpop.f32.mrb[0].mxu0
    %1042 = vdwg.mxu0
    %v1043 = vadd.f32 %v722, %v996
    %v1044 = vadd.f32 %v724, %v998
    %v1045 = vadd.f32 %v763, %v1037
    %v1046 = vadd.f32 %v765, %v1039
    %v1047 = vxor.u32 %v1043, 2147483648
    %v1048 = vxor.u32 %v1044, 2147483648
    %v1049 = vxor.u32 %v1045, 2147483648
    %v1050 = vmul.f32 %v1047, 1.442695
    %v1051 = vpow.pop %v1050
    %v1052 = vmul.f32 %v1048, 1.442695
    %v1053 = vpow.pop %v1052
    %v1054 = vmul.f32 %v1049, 1.442695
    %v1055 = vpow.pop %v1054
    %v1056 = vadd.f32 %v1051, 1.0
    %v1057 = vadd.f32 %v1053, 1.0
    %v1058 = vadd.f32 %v1055, 1.0
    %v1059 = vrcp.pop %v1056
    %v1060 = vmul.f32 1.0, %v1059
    %v1061 = vrcp.pop %v1057
    %v1062 = vmul.f32 1.0, %v1061
    %v1063 = vrcp.pop %v1058
    %v1064 = vmul.f32 1.0, %v1063
    %v1065 = vtanh.pop %v1046
    %v1066 = vmul.f32 %v1062, 0.0
    %v1067 = vmul.f32 %v1060, %v1065
    %v1068 = vadd.f32 %v1066, %v1067
    %v1069 = vtanh.pop %v1068
    %v1070 = vmul.f32 %v1064, %v1069
    %v1071 = vpack.c.bf16 %v1070, %v1070
    %1072 = vmatprep.subr.bf16.mxu0 %v898
    %1073 = vmatpush1.bf16.msra.mxu0 %v897
    %1074 = vmatprep.subr.bf16.mxu0 %v902
    %1075 = vmatpush1.bf16.msra.mxu0 %v901
    %1076 = vmatprep.subr.bf16.mxu0 %v906
    %1077 = vmatpush1.bf16.msra.mxu0 %v905
    %1078 = vmatprep.subr.bf16.mxu0 %v910
    %1079 = vmatpush1.bf16.msra.mxu0 %v909
    %1080 = vmatprep.subr.bf16.mxu0 %v914
    %1081 = vmatpush1.bf16.msra.mxu0 %v913
    %1082 = vmatprep.subr.bf16.mxu0 %v918
    %1083 = vmatpush1.bf16.msra.mxu0 %v917
    %1084 = vmatprep.subr.bf16.mxu0 %v922
    %1085 = vmatpush1.bf16.msra.mxu0 %v921
    %1086 = vmatprep.subr.bf16.mxu0 %v926
    %1087 = vmatpush1.bf16.msra.mxu0 %v925
    %1088 = vmatprep.subr.bf16.mxu0 0
    %1089 = vmatpush1.bf16.msra.mxu0 0
    %1090 = vmatprep.subr.bf16.mxu0 0
    %1091 = vmatpush1.bf16.msra.mxu0 0
    %1092 = vmatprep.subr.bf16.mxu0 0
    %1093 = vmatpush1.bf16.msra.mxu0 0
    %1094 = vmatprep.subr.bf16.mxu0 0
    %1095 = vmatpush1.bf16.msra.mxu0 0
    %1096 = vmatprep.subr.bf16.mxu0 0
    %1097 = vmatpush1.bf16.msra.mxu0 0
    %1098 = vmatprep.subr.bf16.mxu0 0
    %1099 = vmatpush1.bf16.msra.mxu0 0
    %1100 = vmatprep.subr.bf16.mxu0 0
    %1101 = vmatpush1.bf16.msra.mxu0 0
    %1102 = vmatprep.subr.bf16.mxu0 0
    %1103 = vmatpush1.bf16.msra.mxu0 0
    %1104 = vmatprep.mubr.bf16.mxu0 0
    %1105 = vmatmul.mubr.bf16.gmra.mrb[0].mxu0 %v1071
    %v1106 = vpop.f32.mrb[0].mxu0
    %v1107 = vadd.f32 0.0, %v1106
    %v1108 = vpop.f32.mrb[0].mxu0
    %v1109 = vadd.f32 0.0, %v1108
    %v1110 = vpop.f32.mrb[0].mxu0
    %v1111 = vpop.f32.mrb[0].mxu0
    %1112 = vdwg.mxu0
    %1113 = vmatprep.subr.bf16.mxu0 %v900
    %1114 = vmatpush1.bf16.msra.mxu0 %v899
    %1115 = vmatprep.subr.bf16.mxu0 %v904
    %1116 = vmatpush1.bf16.msra.mxu0 %v903
    %1117 = vmatprep.subr.bf16.mxu0 %v908
    %1118 = vmatpush1.bf16.msra.mxu0 %v907
    %1119 = vmatprep.subr.bf16.mxu0 %v912
    %1120 = vmatpush1.bf16.msra.mxu0 %v911
    %1121 = vmatprep.subr.bf16.mxu0 %v916
    %1122 = vmatpush1.bf16.msra.mxu0 %v915
    %1123 = vmatprep.subr.bf16.mxu0 %v920
    %1124 = vmatpush1.bf16.msra.mxu0 %v919
    %1125 = vmatprep.subr.bf16.mxu0 %v924
    %1126 = vmatpush1.bf16.msra.mxu0 %v923
    %1127 = vmatprep.subr.bf16.mxu0 %v928
    %1128 = vmatpush1.bf16.msra.mxu0 %v927
    %1129 = vmatprep.subr.bf16.mxu0 0
    %1130 = vmatpush1.bf16.msra.mxu0 0
    %1131 = vmatprep.subr.bf16.mxu0 0
    %1132 = vmatpush1.bf16.msra.mxu0 0
    %1133 = vmatprep.subr.bf16.mxu0 0
    %1134 = vmatpush1.bf16.msra.mxu0 0
    %1135 = vmatprep.subr.bf16.mxu0 0
    %1136 = vmatpush1.bf16.msra.mxu0 0
    %1137 = vmatprep.subr.bf16.mxu0 0
    %1138 = vmatpush1.bf16.msra.mxu0 0
    %1139 = vmatprep.subr.bf16.mxu0 0
    %1140 = vmatpush1.bf16.msra.mxu0 0
    %1141 = vmatprep.subr.bf16.mxu0 0
    %1142 = vmatpush1.bf16.msra.mxu0 0
    %1143 = vmatprep.subr.bf16.mxu0 0
    %1144 = vmatpush1.bf16.msra.mxu0 0
    %1145 = vmatprep.mubr.bf16.mxu0 0
    %1146 = vmatmul.mubr.bf16.gmra.mrb[0].mxu0 %v1071
    %v1147 = vpop.f32.mrb[0].mxu0
    %v1148 = vadd.f32 0.0, %v1147
    %v1149 = vpop.f32.mrb[0].mxu0
    %v1150 = vadd.f32 0.0, %v1149
    %v1151 = vpop.f32.mrb[0].mxu0
    %v1152 = vpop.f32.mrb[0].mxu0
    %1153 = vdwg.mxu0
    %v1158 = vrot.slane %v1107, 6
    %v1159 = vrot.slane %v1109, 6
    %v1160 = vrot.slane %v1148, 6
    %v1161 = vrot.slane %v1150, 6
    %v1166 = vadd.f32 %v722, %v1158
    %v1167 = vadd.f32 %v724, %v1159
    %v1168 = vadd.f32 %v763, %v1160
    %v1169 = vadd.f32 %v765, %v1161
    %v1170 = vxor.u32 %v1166, 2147483648
    %v1171 = vxor.u32 %v1167, 2147483648
    %v1172 = vxor.u32 %v1168, 2147483648
    %v1173 = vmul.f32 %v1170, 1.442695
    %v1174 = vpow.pop %v1173
    %v1175 = vmul.f32 %v1171, 1.442695
    %v1176 = vpow.pop %v1175
    %v1177 = vmul.f32 %v1172, 1.442695
    %v1178 = vpow.pop %v1177
    %v1179 = vadd.f32 %v1174, 1.0
    %v1180 = vadd.f32 %v1176, 1.0
    %v1181 = vadd.f32 %v1178, 1.0
    %v1182 = vrcp.pop %v1179
    %v1183 = vmul.f32 1.0, %v1182
    %v1184 = vrcp.pop %v1180
    %v1185 = vmul.f32 1.0, %v1184
    %v1186 = vrcp.pop %v1181
    %v1187 = vmul.f32 1.0, %v1186
    %v1188 = vtanh.pop %v1169
    %v1190 = vrot.slane %v1068, 6
    %v1192 = vmul.f32 %v1185, %v1190
    %v1193 = vmul.f32 %v1183, %v1188
    %v1194 = vadd.f32 %v1192, %v1193
    %v1195 = vtanh.pop %v1194
    %v1196 = vmul.f32 %v1187, %v1195
    %v1197 = vpack.c.bf16 %v1196, %v1196
    %v1199 = vrot.slane %v1197, 1
    %1201 = vmatprep.subr.bf16.mxu0 %v898
    %1202 = vmatpush1.bf16.msra.mxu0 %v897
    %1203 = vmatprep.subr.bf16.mxu0 %v902
    %1204 = vmatpush1.bf16.msra.mxu0 %v901
    %1205 = vmatprep.subr.bf16.mxu0 %v906
    %1206 = vmatpush1.bf16.msra.mxu0 %v905
    %1207 = vmatprep.subr.bf16.mxu0 %v910
    %1208 = vmatpush1.bf16.msra.mxu0 %v909
    %1209 = vmatprep.subr.bf16.mxu0 %v914
    %1210 = vmatpush1.bf16.msra.mxu0 %v913
    %1211 = vmatprep.subr.bf16.mxu0 %v918
    %1212 = vmatpush1.bf16.msra.mxu0 %v917
    %1213 = vmatprep.subr.bf16.mxu0 %v922
    %1214 = vmatpush1.bf16.msra.mxu0 %v921
    %1215 = vmatprep.subr.bf16.mxu0 %v926
    %1216 = vmatpush1.bf16.msra.mxu0 %v925
    %1217 = vmatprep.subr.bf16.mxu0 0
    %1218 = vmatpush1.bf16.msra.mxu0 0
    %1219 = vmatprep.subr.bf16.mxu0 0
    %1220 = vmatpush1.bf16.msra.mxu0 0
    %1221 = vmatprep.subr.bf16.mxu0 0
    %1222 = vmatpush1.bf16.msra.mxu0 0
    %1223 = vmatprep.subr.bf16.mxu0 0
    %1224 = vmatpush1.bf16.msra.mxu0 0
    %1225 = vmatprep.subr.bf16.mxu0 0
    %1226 = vmatpush1.bf16.msra.mxu0 0
    %1227 = vmatprep.subr.bf16.mxu0 0
    %1228 = vmatpush1.bf16.msra.mxu0 0
    %1229 = vmatprep.subr.bf16.mxu0 0
    %1230 = vmatpush1.bf16.msra.mxu0 0
    %1231 = vmatprep.subr.bf16.mxu0 0
    %1232 = vmatpush1.bf16.msra.mxu0 0
    %1233 = vmatprep.mubr.bf16.mxu0 0
    %1234 = vmatmul.mubr.bf16.gmra.mrb[0].mxu0 %v1199
    %v1235 = vpop.f32.mrb[0].mxu0
    %v1236 = vadd.f32 0.0, %v1235
    %v1237 = vpop.f32.mrb[0].mxu0
    %v1238 = vadd.f32 0.0, %v1237
    %v1239 = vpop.f32.mrb[0].mxu0
    %v1240 = vpop.f32.mrb[0].mxu0
    %1241 = vdwg.mxu0
    %1242 = vmatprep.subr.bf16.mxu0 %v900
    %1243 = vmatpush1.bf16.msra.mxu0 %v899
    %1244 = vmatprep.subr.bf16.mxu0 %v904
    %1245 = vmatpush1.bf16.msra.mxu0 %v903
    %1246 = vmatprep.subr.bf16.mxu0 %v908
    %1247 = vmatpush1.bf16.msra.mxu0 %v907
    %1248 = vmatprep.subr.bf16.mxu0 %v912
    %1249 = vmatpush1.bf16.msra.mxu0 %v911
    %1250 = vmatprep.subr.bf16.mxu0 %v916
    %1251 = vmatpush1.bf16.msra.mxu0 %v915
    %1252 = vmatprep.subr.bf16.mxu0 %v920
    %1253 = vmatpush1.bf16.msra.mxu0 %v919
    %1254 = vmatprep.subr.bf16.mxu0 %v924
    %1255 = vmatpush1.bf16.msra.mxu0 %v923
    %1256 = vmatprep.subr.bf16.mxu0 %v928
    %1257 = vmatpush1.bf16.msra.mxu0 %v927
    %1258 = vmatprep.subr.bf16.mxu0 0
    %1259 = vmatpush1.bf16.msra.mxu0 0
    %1260 = vmatprep.subr.bf16.mxu0 0
    %1261 = vmatpush1.bf16.msra.mxu0 0
    %1262 = vmatprep.subr.bf16.mxu0 0
    %1263 = vmatpush1.bf16.msra.mxu0 0
    %1264 = vmatprep.subr.bf16.mxu0 0
    %1265 = vmatpush1.bf16.msra.mxu0 0
    %1266 = vmatprep.subr.bf16.mxu0 0
    %1267 = vmatpush1.bf16.msra.mxu0 0
    %1268 = vmatprep.subr.bf16.mxu0 0
    %1269 = vmatpush1.bf16.msra.mxu0 0
    %1270 = vmatprep.subr.bf16.mxu0 0
    %1271 = vmatpush1.bf16.msra.mxu0 0
    %1272 = vmatprep.subr.bf16.mxu0 0
    %1273 = vmatpush1.bf16.msra.mxu0 0
    %1274 = vmatprep.mubr.bf16.mxu0 0
    %1275 = vmatmul.mubr.bf16.gmra.mrb[0].mxu0 %v1199
    %v1276 = vpop.f32.mrb[0].mxu0
    %v1277 = vadd.f32 0.0, %v1276
    %v1278 = vpop.f32.mrb[0].mxu0
    %v1279 = vadd.f32 0.0, %v1278
    %v1280 = vpop.f32.mrb[0].mxu0
    %v1281 = vpop.f32.mrb[0].mxu0
    %1282 = vdwg.mxu0
    %v1287 = vrot.slane %v1236, 4
    %v1288 = vrot.slane %v1238, 4
    %v1289 = vrot.slane %v1277, 4
    %v1290 = vrot.slane %v1279, 4
    %v1295 = vadd.f32 %v722, %v1287
    %v1296 = vadd.f32 %v724, %v1288
    %v1297 = vadd.f32 %v763, %v1289
    %v1298 = vadd.f32 %v765, %v1290
    %v1299 = vxor.u32 %v1295, 2147483648
    %v1300 = vxor.u32 %v1296, 2147483648
    %v1301 = vxor.u32 %v1297, 2147483648
    %v1302 = vmul.f32 %v1299, 1.442695
    %v1303 = vpow.pop %v1302
    %v1304 = vmul.f32 %v1300, 1.442695
    %v1305 = vpow.pop %v1304
    %v1306 = vmul.f32 %v1301, 1.442695
    %v1307 = vpow.pop %v1306
    %v1308 = vadd.f32 %v1303, 1.0
    %v1309 = vadd.f32 %v1305, 1.0
    %v1310 = vadd.f32 %v1307, 1.0
    %v1311 = vrcp.pop %v1308
    %v1312 = vmul.f32 1.0, %v1311
    %v1313 = vrcp.pop %v1309
    %v1314 = vmul.f32 1.0, %v1313
    %v1315 = vrcp.pop %v1310
    %v1316 = vmul.f32 1.0, %v1315
    %v1317 = vtanh.pop %v1298
    %v1319 = vrot.slane %v1194, 6
    %v1321 = vmul.f32 %v1314, %v1319
    %v1322 = vmul.f32 %v1312, %v1317
    %v1323 = vadd.f32 %v1321, %v1322
    %v1324 = vtanh.pop %v1323
    %v1325 = vmul.f32 %v1316, %v1324
    %v1326 = vpack.c.bf16 %v1325, %v1325
    %v1328 = vrot.slane %v1326, 2
    %1330 = vmatprep.subr.bf16.mxu0 %v898
    %1331 = vmatpush1.bf16.msra.mxu0 %v897
    %1332 = vmatprep.subr.bf16.mxu0 %v902
    %1333 = vmatpush1.bf16.msra.mxu0 %v901
    %1334 = vmatprep.subr.bf16.mxu0 %v906
    %1335 = vmatpush1.bf16.msra.mxu0 %v905
    %1336 = vmatprep.subr.bf16.mxu0 %v910
    %1337 = vmatpush1.bf16.msra.mxu0 %v909
    %1338 = vmatprep.subr.bf16.mxu0 %v914
    %1339 = vmatpush1.bf16.msra.mxu0 %v913
    %1340 = vmatprep.subr.bf16.mxu0 %v918
    %1341 = vmatpush1.bf16.msra.mxu0 %v917
    %1342 = vmatprep.subr.bf16.mxu0 %v922
    %1343 = vmatpush1.bf16.msra.mxu0 %v921
    %1344 = vmatprep.subr.bf16.mxu0 %v926
    %1345 = vmatpush1.bf16.msra.mxu0 %v925
    %1346 = vmatprep.subr.bf16.mxu0 0
    %1347 = vmatpush1.bf16.msra.mxu0 0
    %1348 = vmatprep.subr.bf16.mxu0 0
    %1349 = vmatpush1.bf16.msra.mxu0 0
    %1350 = vmatprep.subr.bf16.mxu0 0
    %1351 = vmatpush1.bf16.msra.mxu0 0
    %1352 = vmatprep.subr.bf16.mxu0 0
    %1353 = vmatpush1.bf16.msra.mxu0 0
    %1354 = vmatprep.subr.bf16.mxu0 0
    %1355 = vmatpush1.bf16.msra.mxu0 0
    %1356 = vmatprep.subr.bf16.mxu0 0
    %1357 = vmatpush1.bf16.msra.mxu0 0
    %1358 = vmatprep.subr.bf16.mxu0 0
    %1359 = vmatpush1.bf16.msra.mxu0 0
    %1360 = vmatprep.subr.bf16.mxu0 0
    %1361 = vmatpush1.bf16.msra.mxu0 0
    %1362 = vmatprep.mubr.bf16.mxu0 0
    %1363 = vmatmul.mubr.bf16.gmra.mrb[0].mxu0 %v1328
    %v1364 = vpop.f32.mrb[0].mxu0
    %v1365 = vadd.f32 0.0, %v1364
    %v1366 = vpop.f32.mrb[0].mxu0
    %v1367 = vadd.f32 0.0, %v1366
    %v1368 = vpop.f32.mrb[0].mxu0
    %v1369 = vpop.f32.mrb[0].mxu0
    %1370 = vdwg.mxu0
    %1371 = vmatprep.subr.bf16.mxu0 %v900
    %1372 = vmatpush1.bf16.msra.mxu0 %v899
    %1373 = vmatprep.subr.bf16.mxu0 %v904
    %1374 = vmatpush1.bf16.msra.mxu0 %v903
    %1375 = vmatprep.subr.bf16.mxu0 %v908
    %1376 = vmatpush1.bf16.msra.mxu0 %v907
    %1377 = vmatprep.subr.bf16.mxu0 %v912
    %1378 = vmatpush1.bf16.msra.mxu0 %v911
    %1379 = vmatprep.subr.bf16.mxu0 %v916
    %1380 = vmatpush1.bf16.msra.mxu0 %v915
    %1381 = vmatprep.subr.bf16.mxu0 %v920
    %1382 = vmatpush1.bf16.msra.mxu0 %v919
    %1383 = vmatprep.subr.bf16.mxu0 %v924
    %1384 = vmatpush1.bf16.msra.mxu0 %v923
    %1385 = vmatprep.subr.bf16.mxu0 %v928
    %1386 = vmatpush1.bf16.msra.mxu0 %v927
    %1387 = vmatprep.subr.bf16.mxu0 0
    %1388 = vmatpush1.bf16.msra.mxu0 0
    %1389 = vmatprep.subr.bf16.mxu0 0
    %1390 = vmatpush1.bf16.msra.mxu0 0
    %1391 = vmatprep.subr.bf16.mxu0 0
    %1392 = vmatpush1.bf16.msra.mxu0 0
    %1393 = vmatprep.subr.bf16.mxu0 0
    %1394 = vmatpush1.bf16.msra.mxu0 0
    %1395 = vmatprep.subr.bf16.mxu0 0
    %1396 = vmatpush1.bf16.msra.mxu0 0
    %1397 = vmatprep.subr.bf16.mxu0 0
    %1398 = vmatpush1.bf16.msra.mxu0 0
    %1399 = vmatprep.subr.bf16.mxu0 0
    %1400 = vmatpush1.bf16.msra.mxu0 0
    %1401 = vmatprep.subr.bf16.mxu0 0
    %1402 = vmatpush1.bf16.msra.mxu0 0
    %1403 = vmatprep.mubr.bf16.mxu0 0
    %1404 = vmatmul.mubr.bf16.gmra.mrb[0].mxu0 %v1328
    %v1405 = vpop.f32.mrb[0].mxu0
    %v1406 = vadd.f32 0.0, %v1405
    %v1407 = vpop.f32.mrb[0].mxu0
    %v1408 = vadd.f32 0.0, %v1407
    %v1409 = vpop.f32.mrb[0].mxu0
    %v1410 = vpop.f32.mrb[0].mxu0
    %1411 = vdwg.mxu0
    %v1416 = vrot.slane %v1365, 2
    %v1417 = vrot.slane %v1367, 2
    %v1418 = vrot.slane %v1406, 2
    %v1419 = vrot.slane %v1408, 2
    %v1424 = vadd.f32 %v722, %v1416
    %v1425 = vadd.f32 %v724, %v1417
    %v1426 = vadd.f32 %v763, %v1418
    %v1427 = vadd.f32 %v765, %v1419
    %v1428 = vxor.u32 %v1424, 2147483648
    %v1429 = vxor.u32 %v1425, 2147483648
    %v1430 = vxor.u32 %v1426, 2147483648
    %v1431 = vmul.f32 %v1428, 1.442695
    %v1432 = vpow.pop %v1431
    %v1433 = vmul.f32 %v1429, 1.442695
    %v1434 = vpow.pop %v1433
    %v1435 = vmul.f32 %v1430, 1.442695
    %v1436 = vpow.pop %v1435
    %v1437 = vadd.f32 %v1432, 1.0
    %v1438 = vadd.f32 %v1434, 1.0
    %v1439 = vadd.f32 %v1436, 1.0
    %v1440 = vrcp.pop %v1437
    %v1441 = vmul.f32 1.0, %v1440
    %v1442 = vrcp.pop %v1438
    %v1443 = vmul.f32 1.0, %v1442
    %v1444 = vrcp.pop %v1439
    %v1445 = vmul.f32 1.0, %v1444
    %v1446 = vtanh.pop %v1427
    %v1448 = vrot.slane %v1323, 6
    %v1450 = vmul.f32 %v1443, %v1448
    %v1451 = vmul.f32 %v1441, %v1446
    %v1452 = vadd.f32 %v1450, %v1451
    %v1453 = vtanh.pop %v1452
    %v1454 = vmul.f32 %v1445, %v1453
    %v1455 = vld [vmem:[%s5] sm:$0x1]
    %v1456 = vld [vmem:[%s13] sm:$0x3]
    %v1457 = vld [vmem:[%s14] sm:$0x1]
    %v1459 = vlaneseq
    %v1460 = vshrl.u32 %v1459, 7
    %v1461 = vsub.s32 0, %v1460
    %v1462 = vrot.slane %v1457, %v1461
    %vm1464 = vcmask 31744
    %v1466 = vsel %vm1464, %v1455, 0
    %vm1468 = vcmask 1041408
    %v1470 = vsel %vm1468, %v1456, 0
    %1472 = vmatprep.subr.bf16.mxu0 0
    %1473 = vmatpush1.bf16.msra.mxu0 %v1470
    %1474 = vmatprep.subr.bf16.mxu0 0
    %1475 = vmatpush1.bf16.msra.mxu0 0
    %1476 = vmatprep.subr.bf16.mxu0 0
    %1477 = vmatpush1.bf16.msra.mxu0 0
    %1478 = vmatprep.subr.bf16.mxu0 0
    %1479 = vmatpush1.bf16.msra.mxu0 0
    %1480 = vmatprep.subr.bf16.mxu0 0
    %1481 = vmatpush1.bf16.msra.mxu0 0
    %1482 = vmatprep.subr.bf16.mxu0 0
    %1483 = vmatpush1.bf16.msra.mxu0 0
    %1484 = vmatprep.subr.bf16.mxu0 0
    %1485 = vmatpush1.bf16.msra.mxu0 0
    %1486 = vmatprep.subr.bf16.mxu0 0
    %1487 = vmatpush1.bf16.msra.mxu0 0
    %1488 = vmatprep.subr.bf16.mxu0 0
    %1489 = vmatpush1.bf16.msra.mxu0 0
    %1490 = vmatprep.subr.bf16.mxu0 0
    %1491 = vmatpush1.bf16.msra.mxu0 0
    %1492 = vmatprep.subr.bf16.mxu0 0
    %1493 = vmatpush1.bf16.msra.mxu0 0
    %1494 = vmatprep.subr.bf16.mxu0 0
    %1495 = vmatpush1.bf16.msra.mxu0 0
    %1496 = vmatprep.subr.bf16.mxu0 0
    %1497 = vmatpush1.bf16.msra.mxu0 0
    %1498 = vmatprep.subr.bf16.mxu0 0
    %1499 = vmatpush1.bf16.msra.mxu0 0
    %1500 = vmatprep.subr.bf16.mxu0 0
    %1501 = vmatpush1.bf16.msra.mxu0 0
    %1502 = vmatprep.subr.bf16.mxu0 0
    %1503 = vmatpush1.bf16.msra.mxu0 0
    %1504 = vmatprep.mubr.bf16.mxu0 0
    %1505 = vmatmul.mubr.bf16.gmra.mrb[0].mxu0 %v1466
    %v1506 = vpop.f32.mrb[0].mxu0
    %v1507 = vadd.f32 %v1462, %v1506
    %v1508 = vpop.f32.mrb[0].mxu0
    %v1509 = vpop.f32.mrb[0].mxu0
    %v1510 = vpop.f32.mrb[0].mxu0
    %1511 = vdwg.mxu0
    %v1512 = vmax.f32 %v1507, 0.0
    %v1514 = vrot.slane %v1454, 6
    %v1516 = vpack.c.bf16 %v472, %v472
    %v1517 = vpack.c.bf16 %v1514, %v1514
    %v1518 = vld [vmem:[%s15] sm:$0xf]
    %v1519 = vld [vmem:[%s15 + $0x4] sm:$0xf]
    %v1520 = vld [vmem:[%s15 + $0x8] sm:$0xf]
    %v1521 = vld [vmem:[%s15 + $0xc] sm:$0xf]
    %v1522 = vld [vmem:[%s15 + $0x10] sm:$0xf]
    %v1523 = vld [vmem:[%s15 + $0x14] sm:$0xf]
    %v1524 = vld [vmem:[%s15 + $0x18] sm:$0xf]
    %v1525 = vld [vmem:[%s15 + $0x1c] sm:$0xf]
    %v1526 = vld [vmem:[%s15 + $0x20] sm:$0xf]
    %v1527 = vld [vmem:[%s15 + $0x24] sm:$0xf]
    %v1528 = vld [vmem:[%s15 + $0x28] sm:$0xf]
    %v1529 = vld [vmem:[%s15 + $0x2c] sm:$0xf]
    %v1530 = vld [vmem:[%s15 + $0x30] sm:$0xf]
    %v1531 = vld [vmem:[%s15 + $0x34] sm:$0xf]
    %v1532 = vld [vmem:[%s15 + $0x38] sm:$0xf]
    %v1533 = vld [vmem:[%s15 + $0x3c] sm:$0xf]
    %v1534 = vld [vmem:[%s15 + $0x40] sm:$0xf]
    %v1535 = vld [vmem:[%s15 + $0x44] sm:$0xf]
    %v1536 = vld [vmem:[%s15 + $0x48] sm:$0xf]
    %v1537 = vld [vmem:[%s15 + $0x4c] sm:$0xf]
    %v1538 = vld [vmem:[%s15 + $0x50] sm:$0xf]
    %v1539 = vld [vmem:[%s15 + $0x54] sm:$0xf]
    %v1540 = vld [vmem:[%s15 + $0x58] sm:$0xf]
    %v1541 = vld [vmem:[%s15 + $0x5c] sm:$0xf]
    %v1542 = vld [vmem:[%s15 + $0x60] sm:$0xf]
    %v1543 = vld [vmem:[%s15 + $0x64] sm:$0xf]
    %v1544 = vld [vmem:[%s15 + $0x68] sm:$0xf]
    %v1545 = vld [vmem:[%s15 + $0x6c] sm:$0xf]
    %v1546 = vld [vmem:[%s15 + $0x70] sm:$0xf]
    %v1547 = vld [vmem:[%s15 + $0x74] sm:$0xf]
    %v1548 = vld [vmem:[%s15 + $0x78] sm:$0xf]
    %v1549 = vld [vmem:[%s15 + $0x7c] sm:$0xf]
    %v1550 = vpack.c.bf16 %v1512, %v1512
    %v1551 = vld [vmem:[%s16] sm:$0xf]
    %v1552 = vld [vmem:[%s16 + $0x4] sm:$0xf]
    %v1553 = vld [vmem:[%s16 + $0x8] sm:$0xf]
    %v1554 = vld [vmem:[%s16 + $0xc] sm:$0xf]
    %v1555 = vld [vmem:[%s16 + $0x10] sm:$0xf]
    %v1556 = vld [vmem:[%s16 + $0x14] sm:$0xf]
    %v1557 = vld [vmem:[%s16 + $0x18] sm:$0xf]
    %v1558 = vld [vmem:[%s16 + $0x1c] sm:$0xf]
    %v1567 = vunpack.c.l.b16 %v1551
    %v1568 = vunpack.c.l.b16 %v1552
    %v1569 = vunpack.c.l.b16 %v1553
    %v1570 = vunpack.c.l.b16 %v1554
    %v1571 = vunpack.c.l.b16 %v1555
    %v1572 = vunpack.c.l.b16 %v1556
    %v1573 = vunpack.c.l.b16 %v1557
    %v1574 = vunpack.c.l.b16 %v1558
    %v1575 = vpack.c.b16 %v1568, %v1567
    %v1576 = vpack.c.b16 %v1570, %v1569
    %v1577 = vpack.c.b16 %v1572, %v1571
    %v1578 = vpack.c.b16 %v1574, %v1573
    %vm1583 = vcmask 523264
    %v1585 = vsel %vm1583, %v1550, 0
    %1587 = vmatprep.subr.bf16.mxu0 0
    %1588 = vmatpush1.bf16.msra.mxu0 %v1575
    %1589 = vmatprep.subr.bf16.mxu0 0
    %1590 = vmatpush1.bf16.msra.mxu0 %v1576
    %1591 = vmatprep.subr.bf16.mxu0 0
    %1592 = vmatpush1.bf16.msra.mxu0 %v1577
    %1593 = vmatprep.subr.bf16.mxu0 0
    %1594 = vmatpush1.bf16.msra.mxu0 %v1578
    %1595 = vmatprep.subr.bf16.mxu0 0
    %1596 = vmatpush1.bf16.msra.mxu0 0
    %1597 = vmatprep.subr.bf16.mxu0 0
    %1598 = vmatpush1.bf16.msra.mxu0 0
    %1599 = vmatprep.subr.bf16.mxu0 0
    %1600 = vmatpush1.bf16.msra.mxu0 0
    %1601 = vmatprep.subr.bf16.mxu0 0
    %1602 = vmatpush1.bf16.msra.mxu0 0
    %1603 = vmatprep.subr.bf16.mxu0 0
    %1604 = vmatpush1.bf16.msra.mxu0 0
    %1605 = vmatprep.subr.bf16.mxu0 0
    %1606 = vmatpush1.bf16.msra.mxu0 0
    %1607 = vmatprep.subr.bf16.mxu0 0
    %1608 = vmatpush1.bf16.msra.mxu0 0
    %1609 = vmatprep.subr.bf16.mxu0 0
    %1610 = vmatpush1.bf16.msra.mxu0 0
    %1611 = vmatprep.subr.bf16.mxu0 0
    %1612 = vmatpush1.bf16.msra.mxu0 0
    %1613 = vmatprep.subr.bf16.mxu0 0
    %1614 = vmatpush1.bf16.msra.mxu0 0
    %1615 = vmatprep.subr.bf16.mxu0 0
    %1616 = vmatpush1.bf16.msra.mxu0 0
    %1617 = vmatprep.subr.bf16.mxu0 0
    %1618 = vmatpush1.bf16.msra.mxu0 0
    %1619 = vmatprep.mubr.bf16.mxu0 0
    %1620 = vmatmul.mubr.bf16.gmra.mrb[0].mxu0 %v1585
    %v1621 = vpop.f32.mrb[0].mxu0
    %v1622 = vadd.f32 0.0, %v1621
    %v1623 = vpop.f32.mrb[0].mxu0
    %v1624 = vpop.f32.mrb[0].mxu0
    %v1625 = vpop.f32.mrb[0].mxu0
    %1626 = vdwg.mxu0
    %v1659 = vunpack.c.l.b16 %v1518
    %v1660 = vunpack.c.l.b16 %v1519
    %v1661 = vunpack.c.l.b16 %v1520
    %v1662 = vunpack.c.l.b16 %v1521
    %v1663 = vunpack.c.l.b16 %v1522
    %v1664 = vunpack.c.l.b16 %v1523
    %v1665 = vunpack.c.l.b16 %v1524
    %v1666 = vunpack.c.l.b16 %v1525
    %v1667 = vunpack.c.l.b16 %v1526
    %v1668 = vunpack.c.l.b16 %v1527
    %v1669 = vunpack.c.l.b16 %v1528
    %v1670 = vunpack.c.l.b16 %v1529
    %v1671 = vunpack.c.l.b16 %v1530
    %v1672 = vunpack.c.l.b16 %v1531
    %v1673 = vunpack.c.l.b16 %v1532
    %v1674 = vunpack.c.l.b16 %v1533
    %v1675 = vunpack.c.l.b16 %v1534
    %v1676 = vunpack.c.l.b16 %v1535
    %v1677 = vunpack.c.l.b16 %v1536
    %v1678 = vunpack.c.l.b16 %v1537
    %v1679 = vunpack.c.l.b16 %v1538
    %v1680 = vunpack.c.l.b16 %v1539
    %v1681 = vunpack.c.l.b16 %v1540
    %v1682 = vunpack.c.l.b16 %v1541
    %v1683 = vunpack.c.l.b16 %v1542
    %v1684 = vunpack.c.l.b16 %v1543
    %v1685 = vunpack.c.l.b16 %v1544
    %v1686 = vunpack.c.l.b16 %v1545
    %v1687 = vunpack.c.l.b16 %v1546
    %v1688 = vunpack.c.l.b16 %v1547
    %v1689 = vunpack.c.l.b16 %v1548
    %v1690 = vunpack.c.l.b16 %v1549
    %v1691 = vpack.c.b16 %v1660, %v1659
    %v1692 = vpack.c.b16 %v1662, %v1661
    %v1693 = vpack.c.b16 %v1664, %v1663
    %v1694 = vpack.c.b16 %v1666, %v1665
    %v1695 = vpack.c.b16 %v1668, %v1667
    %v1696 = vpack.c.b16 %v1670, %v1669
    %v1697 = vpack.c.b16 %v1672, %v1671
    %v1698 = vpack.c.b16 %v1674, %v1673
    %v1699 = vpack.c.b16 %v1676, %v1675
    %v1700 = vpack.c.b16 %v1678, %v1677
    %v1701 = vpack.c.b16 %v1680, %v1679
    %v1702 = vpack.c.b16 %v1682, %v1681
    %v1703 = vpack.c.b16 %v1684, %v1683
    %v1704 = vpack.c.b16 %v1686, %v1685
    %v1705 = vpack.c.b16 %v1688, %v1687
    %v1706 = vpack.c.b16 %v1690, %v1689
    %1723 = vmatprep.subr.bf16.mxu0 0
    %1724 = vmatpush1.bf16.msra.mxu0 %v1691
    %1725 = vmatprep.subr.bf16.mxu0 0
    %1726 = vmatpush1.bf16.msra.mxu0 %v1692
    %1727 = vmatprep.subr.bf16.mxu0 0
    %1728 = vmatpush1.bf16.msra.mxu0 %v1693
    %1729 = vmatprep.subr.bf16.mxu0 0
    %1730 = vmatpush1.bf16.msra.mxu0 %v1694
    %1731 = vmatprep.subr.bf16.mxu0 0
    %1732 = vmatpush1.bf16.msra.mxu0 %v1695
    %1733 = vmatprep.subr.bf16.mxu0 0
    %1734 = vmatpush1.bf16.msra.mxu0 %v1696
    %1735 = vmatprep.subr.bf16.mxu0 0
    %1736 = vmatpush1.bf16.msra.mxu0 %v1697
    %1737 = vmatprep.subr.bf16.mxu0 0
    %1738 = vmatpush1.bf16.msra.mxu0 %v1698
    %1739 = vmatprep.subr.bf16.mxu0 0
    %1740 = vmatpush1.bf16.msra.mxu0 %v1699
    %1741 = vmatprep.subr.bf16.mxu0 0
    %1742 = vmatpush1.bf16.msra.mxu0 %v1700
    %1743 = vmatprep.subr.bf16.mxu0 0
    %1744 = vmatpush1.bf16.msra.mxu0 %v1701
    %1745 = vmatprep.subr.bf16.mxu0 0
    %1746 = vmatpush1.bf16.msra.mxu0 %v1702
    %1747 = vmatprep.subr.bf16.mxu0 0
    %1748 = vmatpush1.bf16.msra.mxu0 %v1703
    %1749 = vmatprep.subr.bf16.mxu0 0
    %1750 = vmatpush1.bf16.msra.mxu0 %v1704
    %1751 = vmatprep.subr.bf16.mxu0 0
    %1752 = vmatpush1.bf16.msra.mxu0 %v1705
    %1753 = vmatprep.subr.bf16.mxu0 0
    %1754 = vmatpush1.bf16.msra.mxu0 %v1706
    %1755 = vmatprep.mubr.bf16.mxu0 %v1517
    %1756 = vmatmul.mubr.bf16.gmra.mrb[0].mxu0 %v1516
    %v1757 = vpop.f32.mrb[0].mxu0
    %v1758 = vadd.f32 %v1622, %v1757
    %v1759 = vpop.f32.mrb[0].mxu0
    %v1760 = vpop.f32.mrb[0].mxu0
    %v1761 = vpop.f32.mrb[0].mxu0
    %1762 = vdwg.mxu0
    %v1763 = vld [vmem:[%s17] sm:$0x1]
    %v1765 = vlaneseq
    %v1766 = vshrl.u32 %v1765, 7
    %v1767 = vsub.s32 0, %v1766
    %v1768 = vrot.slane %v1763, %v1767
    %v1770 = vadd.f32 %v1758, %v1768
    %v1771 = vmax.f32 %v1770, 0.0
    %v1772 = vpack.c.bf16 %v1771, %v1771
    %v1773 = vld [vmem:[%s18] sm:$0x1]
    %v1774 = vld [vmem:[#allocation2] sm:$0x1]
    %1776 = vset.pattern.permute.xlu0 0
    %1777 = vperm.xlu0 %1776, %v1774
    %v1778 = vpop.permute.xlu0 %1777
    %v1780 = vlaneseq
    %v1781 = vshrl.u32 %v1780, 7
    %v1782 = vsub.s32 0, %v1781
    %v1783 = vrot.slane %v1778, %v1782
    %1784 = vmatprep.subr.bf16.mxu0 0
    %1785 = vmatpush1.bf16.xpose.msra.mxu0 %v1772
    %1786 = vmatprep.subr.bf16.mxu0 0
    %1787 = vmatpush1.bf16.xpose.msra.mxu0 0
    %1788 = vmatprep.subr.bf16.mxu0 0
    %1789 = vmatpush1.bf16.xpose.msra.mxu0 0
    %1790 = vmatprep.subr.bf16.mxu0 0
    %1791 = vmatpush1.bf16.xpose.msra.mxu0 0
    %1792 = vmatprep.subr.bf16.mxu0 0
    %1793 = vmatpush1.bf16.xpose.msra.mxu0 0
    %1794 = vmatprep.subr.bf16.mxu0 0
    %1795 = vmatpush1.bf16.xpose.msra.mxu0 0
    %1796 = vmatprep.subr.bf16.mxu0 0
    %1797 = vmatpush1.bf16.xpose.msra.mxu0 0
    %1798 = vmatprep.subr.bf16.mxu0 0
    %1799 = vmatpush1.bf16.xpose.msra.mxu0 0
    %1800 = vmatprep.subr.bf16.mxu0 0
    %1801 = vmatpush1.bf16.xpose.msra.mxu0 0
    %1802 = vmatprep.subr.bf16.mxu0 0
    %1803 = vmatpush1.bf16.xpose.msra.mxu0 0
    %1804 = vmatprep.subr.bf16.mxu0 0
    %1805 = vmatpush1.bf16.xpose.msra.mxu0 0
    %1806 = vmatprep.subr.bf16.mxu0 0
    %1807 = vmatpush1.bf16.xpose.msra.mxu0 0
    %1808 = vmatprep.subr.bf16.mxu0 0
    %1809 = vmatpush1.bf16.xpose.msra.mxu0 0
    %1810 = vmatprep.subr.bf16.mxu0 0
    %1811 = vmatpush1.bf16.xpose.msra.mxu0 0
    %1812 = vmatprep.subr.bf16.mxu0 0
    %1813 = vmatpush1.bf16.xpose.msra.mxu0 0
    %1814 = vmatprep.subr.bf16.mxu0 0
    %1815 = vmatpush1.bf16.xpose.msra.mxu0 0
    %1816 = vmatprep.mubr.bf16.mxu0 0
    %1817 = vmatmul.mubr.bf16.gmra.mrb[0].mxu0 %v1773
    %v1818 = vpop.f32.mrb[0].mxu0
    %v1819 = vadd.f32 %v1783, %v1818
    %v1820 = vpop.f32.mrb[0].mxu0
    %v1821 = vpop.f32.mrb[0].mxu0
    %v1822 = vpop.f32.mrb[0].mxu0
    %1823 = vdwg.mxu0
    %vm1824 = vcmask 8192
    %1825 = vst.msk [vmem:[#allocation3] sm:$0x1] %vm1824, %v1819
    // Predicated region
    $region82: #{forward.1} parent=1 // pred_check
      _
    $region83: #{forward.1} parent=1 // pred_check_branch
      %1827 = sbr.rel (0) target = $region85
    $region84: #{forward.1} parent=1 // pred_region
      %s1829 = ssub.s32 16, 16
      %1830 = vsyncadd [#allocation4], %s1829
      %s1832 = sshll.u32 [#allocation3], 4
      %s1833 = int_to_ptr.vmem [resolvable:$true] %s1832
      %1835 = dma.vmem_to_hbm [thread:$0]  %s1833, 16, %s20, [#allocation4]
    $region85: #{forward.1} parent=1 // pred_fallthru
      _
    // Predicated region
    $region86: #{forward.1} parent=1 // pred_check
      _
    $region87: #{forward.1} parent=1 // pred_check_branch
      %1837 = sbr.rel (0) target = $region89
    $region88: #{forward.1} parent=1 // pred_region
      %1838 = dma.done [#allocation4], 16
    $region89: #{forward.1} parent=1 // pred_fallthru
      _
    %1839 = vsyncpa [#allocation4], 1

</llo_original>
